<compile_context>
chip_gen: v7x
topology: tpu7x:2x2x1
jax: 0.10.0
libtpu: 0.0.40
codegen_flags: <defaults>
</compile_context>

<pallas_src>
import jax
import jax.numpy as jnp
from jax import lax
from jax.experimental import pallas as pl
from jax.experimental.pallas import tpu as pltpu

# ----------------------------- config (small, synthetic) --------------------
BATCH = 2
SEQ = 8             # context_length
EMB = 64            # emb_dim
N_HEADS = 4
N_KV_GROUPS = 2
HEAD_DIM = EMB // N_HEADS             # 16
ROPE_HALF = HEAD_DIM // 2             # 8
KV_DIM = N_KV_GROUPS * HEAD_DIM       # 32
GROUP_SIZE = N_HEADS // N_KV_GROUPS   # 2
HIDDEN = 128        # ffn hidden_dim
ROPE_BASE = 500000.0
EPS = 1e-5
QKV_OUT = EMB + 2 * KV_DIM            # 128 (lane-dense fused QKV output)
UP_OUT = 2 * HIDDEN                   # 256 (lane-dense fused fc1|fc2 output)
OUT_LANES = 128                       # lane-padded output width


# ----------------------------- Pallas kernel --------------------------------
def llama3_block_kernel(x_ref, wqkv_ref, wo_ref, w12_ref, w3_ref,
                        n1_ref, n2_ref, cos_ref, sinm_ref, sinp_ref, bias_ref,
                        o_ref):
    """One batch element per grid step: block is (SEQ, EMB)."""
    x = x_ref[...]                                     # (S, D) f32

    # ---- RMSNorm 1 (f32) ----
    ms1 = jnp.mean(x * x, axis=-1, keepdims=True)
    xn1 = (x * lax.rsqrt(ms1 + EPS)) * n1_ref[...]
    xb = xn1.astype(jnp.bfloat16)                      # .to(bfloat16) before attention

    # ---- fused Q|K|V projection (128-lane-dense), kept f32 for RoPE ----
    qkv = jnp.dot(xb, wqkv_ref[...], preferred_element_type=jnp.float32)   # (S, 128)

    # ---- RoPE via two lane rolls (XLU) + masked +/-sin tables ----
    # roll_m[lane i] = qkv[i + half]  (used on first-half lanes, * -sin)
    # roll_p[lane i] = qkv[i - half]  (used on second-half lanes, * +sin)
    # cross-block wraparound lanes are zeroed by the sin masks; v lanes have
    # cos=1, sin=0 so pass through.  1/sqrt(head_dim) folded into q lanes.
    roll_m = pltpu.roll(qkv, QKV_OUT - ROPE_HALF, 1)
    roll_p = pltpu.roll(qkv, ROPE_HALF, 1)
    roped = qkv * cos_ref[...] + roll_m * sinm_ref[...] + roll_p * sinp_ref[...]
    roped = roped.astype(jnp.bfloat16)                 # single bf16 cast (q|k roped, v identity)

    # ---- GQA attention: loop over KV groups; q heads of a group stacked on sublanes ----
    wo = wo_ref[...]
    bias = bias_ref[...]                               # (GROUP_SIZE*S, S) additive 0/-1e30
    att = jnp.zeros((SEQ, EMB), jnp.float32)
    for g in range(N_KV_GROUPS):
        ko = EMB + g * HEAD_DIM
        vo = EMB + KV_DIM + g * HEAD_DIM
        k_g = roped[:, ko:ko + HEAD_DIM]               # hoisted: sliced once per group
        v_g = roped[:, vo:vo + HEAD_DIM]
        h0 = g * GROUP_SIZE
        q_cat = jnp.concatenate(
            [roped[:, (h0 + j) * HEAD_DIM:(h0 + j + 1) * HEAD_DIM]
             for j in range(GROUP_SIZE)], axis=0)      # (GROUP_SIZE*S, HEAD_DIM)
        scores = lax.dot_general(q_cat, k_g, (((1,), (1,)), ((), ())),
                                 preferred_element_type=jnp.float32)  # (2S, S)
        scores = scores + bias
        m = jnp.max(scores, axis=-1, keepdims=True)
        e = jnp.exp(scores - m)
        p = e * pl.reciprocal(jnp.sum(e, axis=-1, keepdims=True), approx=True)
        ctx = jnp.dot(p.astype(jnp.bfloat16), v_g,
                      preferred_element_type=jnp.float32).astype(jnp.bfloat16)  # (2S, HD)
        # per-head Wo slices accumulated in f32 == concat(heads) @ Wo
        for j in range(GROUP_SIZE):
            h = h0 + j
            att = att + jnp.dot(ctx[j * SEQ:(j + 1) * SEQ, :],
                                wo[h * HEAD_DIM:(h + 1) * HEAD_DIM, :],
                                preferred_element_type=jnp.float32)

    # ---- residual 1 ----
    h1 = x + att

    # ---- RMSNorm 2 ----
    ms2 = jnp.mean(h1 * h1, axis=-1, keepdims=True)
    xn2 = (h1 * lax.rsqrt(ms2 + EPS)) * n2_ref[...]
    xb2 = xn2.astype(jnp.bfloat16)                     # .to(bfloat16) before FFN

    # ---- SwiGLU FFN: fc3(silu(fc1(x)) * fc2(x)); fc1|fc2 fused, 128-lane-aligned split ----
    up = jnp.dot(xb2, w12_ref[...], preferred_element_type=jnp.float32)    # (S, 256)
    a = up[:, :HIDDEN]
    b = up[:, HIDDEN:]
    gated = (a * jax.nn.sigmoid(a) * b).astype(jnp.bfloat16)
    ff = jnp.dot(gated, w3_ref[...], preferred_element_type=jnp.float32)

    # ---- residual 2, lane-dense (128-wide) store; wrapper slices back to EMB ----
    out = h1 + ff
    o_ref[...] = jnp.concatenate(
        [out, jnp.zeros((SEQ, OUT_LANES - EMB), jnp.float32)], axis=-1)


# ----------------------------- wrapper helpers --------------------------------
def _rope_tables(cos, sin):
    """(SEQ, QKV_OUT) cos and masked +/-sin tables; scale folded into q lanes."""
    scale = 1.0 / (HEAD_DIM ** 0.5)
    lane = jnp.arange(HEAD_DIM)
    first = (lane < ROPE_HALF).astype(jnp.float32)[None, :]     # (1, HD)
    second = 1.0 - first
    sin_m_blk = -sin * first                                    # -sin on first-half lanes
    sin_p_blk = sin * second                                    # +sin on second-half lanes

    ones_v = jnp.ones((SEQ, KV_DIM), jnp.float32)
    zeros_v = jnp.zeros((SEQ, KV_DIM), jnp.float32)
    cos_full = jnp.concatenate(
        [scale * jnp.tile(cos, (1, N_HEADS)), jnp.tile(cos, (1, N_KV_GROUPS)), ones_v],
        axis=1)
    sin_m = jnp.concatenate(
        [scale * jnp.tile(sin_m_blk, (1, N_HEADS)), jnp.tile(sin_m_blk, (1, N_KV_GROUPS)), zeros_v],
        axis=1)
    sin_p = jnp.concatenate(
        [scale * jnp.tile(sin_p_blk, (1, N_HEADS)), jnp.tile(sin_p_blk, (1, N_KV_GROUPS)), zeros_v],
        axis=1)
    return cos_full, sin_m, sin_p


def _causal_bias():
    """Additive causal mask bias, tiled for GROUP_SIZE sublane-stacked q heads."""
    r = jnp.arange(SEQ)
    causal = r[:, None] >= r[None, :]
    bias = jnp.where(causal, 0.0, -1e30).astype(jnp.float32)    # (S, S)
    return jnp.concatenate([bias] * GROUP_SIZE, axis=0)         # (GROUP_SIZE*S, S)


@jax.jit
def llama3_block(x, params, cos, sin):
    wq, wk, wv, wo, w1, w2, w3, n1, n2 = params
    B, S, D = x.shape
    wqkv = jnp.concatenate([wq, wk, wv], axis=1)       # (D, 128) bf16
    w12 = jnp.concatenate([w1, w2], axis=1)            # (D, 256) bf16
    cos_f, sin_m, sin_p = _rope_tables(cos, sin)
    bias = _causal_bias()

    x2d = x.reshape(B * S, D)
    const = lambda shape: pl.BlockSpec(shape, lambda b, _s=shape: (0,) * len(_s))

    out = pl.pallas_call(
        llama3_block_kernel,
        out_shape=jax.ShapeDtypeStruct((B * S, OUT_LANES), jnp.float32),
        grid=(B,),
        in_specs=[
            pl.BlockSpec((SEQ, EMB), lambda b: (b, 0)),   # x (one batch row block / step)
            const((EMB, QKV_OUT)),        # Wq|Wk|Wv fused
            const((EMB, EMB)),            # Wo
            const((EMB, UP_OUT)),         # W1|W2 fused
            const((HIDDEN, EMB)),         # W3
            const((1, EMB)),              # norm1 weight
            const((1, EMB)),              # norm2 weight
            const((SEQ, QKV_OUT)),        # cos table (scale folded into q)
            const((SEQ, QKV_OUT)),        # masked -sin table (first-half lanes)
            const((SEQ, QKV_OUT)),        # masked +sin table (second-half lanes)
            const((GROUP_SIZE * SEQ, SEQ)),  # additive causal bias
        ],
        out_specs=pl.BlockSpec((SEQ, OUT_LANES), lambda b: (b, 0)),
        compiler_params=pltpu.CompilerParams(
            dimension_semantics=("parallel",)),
    )(x2d, wqkv, wo, w12, w3, n1, n2, cos_f, sin_m, sin_p, bias)
    return out.reshape(B, S, OUT_LANES)[..., :D]


# ----------------------------- pure-JAX reference ----------------------------
def reference_block(x, params, cos, sin):
    wq, wk, wv, wo, w1, w2, w3, n1, n2 = params
    half = HEAD_DIM // 2

    def rope(t):  # (S, hd) bf16
        rot = jnp.concatenate([-t[:, half:], t[:, :half]], axis=-1)
        return (t.astype(jnp.float32) * cos + rot.astype(jnp.float32) * sin).astype(jnp.bfloat16)

    def one(xb_):  # (S, D) f32
        ms1 = jnp.mean(xb_ * xb_, axis=-1, keepdims=True)
        xn1 = (xb_ * jax.lax.rsqrt(ms1 + EPS)) * n1
        xb = xn1.astype(jnp.bfloat16)
        q = jnp.dot(xb, wq, preferred_element_type=jnp.float32).astype(jnp.bfloat16)
        k = jnp.dot(xb, wk, preferred_element_type=jnp.float32).astype(jnp.bfloat16)
        v = jnp.dot(xb, wv, preferred_element_type=jnp.float32).astype(jnp.bfloat16)
        S = xb_.shape[0]
        causal = jnp.tril(jnp.ones((S, S), bool))
        scale = 1.0 / (HEAD_DIM ** 0.5)
        heads = []
        for h in range(N_HEADS):
            g = h // GROUP_SIZE
            q_h = rope(q[:, h * HEAD_DIM:(h + 1) * HEAD_DIM])
            k_g = rope(k[:, g * HEAD_DIM:(g + 1) * HEAD_DIM])
            v_g = v[:, g * HEAD_DIM:(g + 1) * HEAD_DIM]
            s = jnp.dot(q_h, k_g.T, preferred_element_type=jnp.float32)
            s = jnp.where(causal, s * scale, -jnp.inf)
            w = jax.nn.softmax(s, axis=-1)
            heads.append(jnp.dot(w.astype(jnp.bfloat16), v_g,
                                 preferred_element_type=jnp.float32).astype(jnp.bfloat16))
        ctx = jnp.concatenate(heads, axis=-1)
        att = jnp.dot(ctx, wo, preferred_element_type=jnp.float32).astype(jnp.bfloat16)
        h1 = xb_ + att.astype(jnp.float32)
        ms2 = jnp.mean(h1 * h1, axis=-1, keepdims=True)
        xn2 = (h1 * jax.lax.rsqrt(ms2 + EPS)) * n2
        xb2 = xn2.astype(jnp.bfloat16)
        a = jnp.dot(xb2, w1, preferred_element_type=jnp.float32).astype(jnp.bfloat16)
        b = jnp.dot(xb2, w2, preferred_element_type=jnp.float32).astype(jnp.bfloat16)
        a32 = a.astype(jnp.float32)
        gated = (a32 * jax.nn.sigmoid(a32)).astype(jnp.bfloat16) * b
        ff = jnp.dot(gated, w3, preferred_element_type=jnp.float32).astype(jnp.bfloat16)
        return h1 + ff.astype(jnp.float32)

    return jax.vmap(one)(x)


# ----------------------------- main ------------------------------------------
if __name__ == "__main__":
    key = jax.random.PRNGKey(0)
    ks = jax.random.split(key, 9)

    def winit(k, shape):
        return (0.02 * jax.random.normal(k, shape, jnp.float32)).astype(jnp.bfloat16)

    wq = winit(ks[0], (EMB, EMB))
    wk = winit(ks[1], (EMB, KV_DIM))
    wv = winit(ks[2], (EMB, KV_DIM))
    wo = winit(ks[3], (EMB, EMB))
    w1 = winit(ks[4], (EMB, HIDDEN))
    w2 = winit(ks[5], (EMB, HIDDEN))
    w3 = winit(ks[6], (HIDDEN, EMB))
    n1 = jnp.ones((1, EMB), jnp.float32)   # RMSNorm init = ones (as in __init__)
    n2 = jnp.ones((1, EMB), jnp.float32)
    params = (wq, wk, wv, wo, w1, w2, w3, n1, n2)

    # RoPE tables (rope_freq=None -> no llama3.1 frequency rescaling)
    inv_freq = 1.0 / (ROPE_BASE ** (jnp.arange(0, HEAD_DIM, 2, dtype=jnp.float32) / HEAD_DIM))
    pos = jnp.arange(SEQ, dtype=jnp.float32)
    angles = pos[:, None] * inv_freq[None, :]
    angles = jnp.concatenate([angles, angles], axis=1)     # (S, HEAD_DIM)
    cos = jnp.cos(angles)
    sin = jnp.sin(angles)

    x = jax.random.normal(ks[7], (BATCH, SEQ, EMB), jnp.float32)

    out = llama3_block(x, params, cos, sin)
    out = jax.block_until_ready(out)

    ref = reference_block(x, params, cos, sin)
    assert out.shape == (BATCH, SEQ, EMB)
    assert bool(jnp.all(jnp.isfinite(out)))
    assert bool(jnp.allclose(out, ref, rtol=5e-2, atol=5e-2))

    print("KERNEL_OK")
</pallas_src>

<mosaic_0001>
module attributes {stable_mosaic.version = 11 : i64} {
  func.func @llama3_block_kernel(%arg0: i32, %arg1: memref<8x64xf32, #tpu.memory_space<vmem>>, %arg2: memref<64x128xbf16, #tpu.memory_space<vmem>>, %arg3: memref<64x64xbf16, #tpu.memory_space<vmem>>, %arg4: memref<64x256xbf16, #tpu.memory_space<vmem>>, %arg5: memref<128x64xbf16, #tpu.memory_space<vmem>>, %arg6: memref<1x64xf32, #tpu.memory_space<vmem>>, %arg7: memref<1x64xf32, #tpu.memory_space<vmem>>, %arg8: memref<8x128xf32, #tpu.memory_space<vmem>>, %arg9: memref<8x128xf32, #tpu.memory_space<vmem>>, %arg10: memref<8x128xf32, #tpu.memory_space<vmem>>, %arg11: memref<16x8xf32, #tpu.memory_space<vmem>>, %arg12: memref<8x128xf32, #tpu.memory_space<vmem>>) attributes {dimension_semantics = [#tpu.dimension_semantics<parallel>], iteration_bounds = array<i64: 2>, scalar_prefetch = 0 : i64, scratch_operands = 0 : i64, tpu.core_type = #tpu.core_type<tc>, window_params = [{transform_indices = @transform_0, window_bounds = array<i64: 8, 64>}, {pipeline_mode = #tpu.pipeline_mode<synchronous>, transform_indices = @transform_1, window_bounds = array<i64: 64, 128>}, {pipeline_mode = #tpu.pipeline_mode<synchronous>, transform_indices = @transform_2, window_bounds = array<i64: 64, 64>}, {pipeline_mode = #tpu.pipeline_mode<synchronous>, transform_indices = @transform_3, window_bounds = array<i64: 64, 256>}, {pipeline_mode = #tpu.pipeline_mode<synchronous>, transform_indices = @transform_4, window_bounds = array<i64: 128, 64>}, {pipeline_mode = #tpu.pipeline_mode<synchronous>, transform_indices = @transform_5, window_bounds = array<i64: 1, 64>}, {pipeline_mode = #tpu.pipeline_mode<synchronous>, transform_indices = @transform_6, window_bounds = array<i64: 1, 64>}, {pipeline_mode = #tpu.pipeline_mode<synchronous>, transform_indices = @transform_7, window_bounds = array<i64: 8, 128>}, {pipeline_mode = #tpu.pipeline_mode<synchronous>, transform_indices = @transform_8, window_bounds = array<i64: 8, 128>}, {pipeline_mode = #tpu.pipeline_mode<synchronous>, transform_indices = @transform_9, window_bounds = array<i64: 8, 128>}, {pipeline_mode = #tpu.pipeline_mode<synchronous>, transform_indices = @transform_10, window_bounds = array<i64: 16, 8>}, {transform_indices = @transform_11, window_bounds = array<i64: 8, 128>}]} {
    %c0 = arith.constant 0 : index
    %c0_0 = arith.constant 0 : index
    %0 = vector.load %arg1[%c0, %c0_0] : memref<8x64xf32, #tpu.memory_space<vmem>>, vector<8x64xf32>
    %1 = arith.mulf %0, %0 : vector<8x64xf32>
    %cst = arith.constant dense<0.000000e+00> : vector<8xf32>
    %2 = vector.multi_reduction <add>, %1, %cst [1] : vector<8x64xf32> to vector<8xf32>
    %3 = vector.shape_cast %2 : vector<8xf32> to vector<8x1xf32>
    %cst_1 = arith.constant 6.400000e+01 : f32
    %4 = vector.broadcast %cst_1 : f32 to vector<8x1xf32>
    %5 = arith.divf %3, %4 : vector<8x1xf32>
    %cst_2 = arith.constant 9.99999974E-6 : f32
    %6 = vector.broadcast %cst_2 : f32 to vector<8x1xf32>
    %7 = arith.addf %5, %6 : vector<8x1xf32>
    %8 = math.rsqrt %7 : vector<8x1xf32>
    %9 = vector.broadcast %8 : vector<8x1xf32> to vector<8x64xf32>
    %10 = arith.mulf %0, %9 : vector<8x64xf32>
    %c0_3 = arith.constant 0 : index
    %c0_4 = arith.constant 0 : index
    %11 = vector.load %arg6[%c0_3, %c0_4] : memref<1x64xf32, #tpu.memory_space<vmem>>, vector<1x64xf32>
    %12 = vector.broadcast %11 : vector<1x64xf32> to vector<8x64xf32>
    %13 = arith.mulf %10, %12 : vector<8x64xf32>
    %14 = arith.truncf %13 : vector<8x64xf32> to vector<8x64xbf16>
    %c0_5 = arith.constant 0 : index
    %c0_6 = arith.constant 0 : index
    %15 = vector.load %arg2[%c0_5, %c0_6] : memref<64x128xbf16, #tpu.memory_space<vmem>>, vector<64x128xbf16>
    %cst_7 = arith.constant dense<0.000000e+00> : vector<8x128xf32>
    %16 = tpu.matmul %14, %15, %cst_7 {dimension_numbers = #tpu.dot_dimension_numbers<[1], [0], [0], [1], [0, 0, 1, 1], [], []>} : vector<8x64xbf16>, vector<64x128xbf16>, vector<8x128xf32> -> vector<8x128xf32>
    %c120_i32 = arith.constant 120 : i32
    %17 = tpu.dynamic_rotate %16 by %c120_i32 dim 1 : vector<8x128xf32>, i32 -> vector<8x128xf32>
    %c8_i32 = arith.constant 8 : i32
    %18 = tpu.dynamic_rotate %16 by %c8_i32 dim 1 : vector<8x128xf32>, i32 -> vector<8x128xf32>
    %c0_8 = arith.constant 0 : index
    %c0_9 = arith.constant 0 : index
    %19 = vector.load %arg8[%c0_8, %c0_9] : memref<8x128xf32, #tpu.memory_space<vmem>>, vector<8x128xf32>
    %20 = arith.mulf %16, %19 : vector<8x128xf32>
    %c0_10 = arith.constant 0 : index
    %c0_11 = arith.constant 0 : index
    %21 = vector.load %arg9[%c0_10, %c0_11] : memref<8x128xf32, #tpu.memory_space<vmem>>, vector<8x128xf32>
    %22 = arith.mulf %17, %21 : vector<8x128xf32>
    %23 = arith.addf %20, %22 : vector<8x128xf32>
    %c0_12 = arith.constant 0 : index
    %c0_13 = arith.constant 0 : index
    %24 = vector.load %arg10[%c0_12, %c0_13] : memref<8x128xf32, #tpu.memory_space<vmem>>, vector<8x128xf32>
    %25 = arith.mulf %18, %24 : vector<8x128xf32>
    %26 = arith.addf %23, %25 : vector<8x128xf32>
    %27 = arith.truncf %26 : vector<8x128xf32> to vector<8x128xbf16>
    %c0_14 = arith.constant 0 : index
    %c0_15 = arith.constant 0 : index
    %28 = vector.load %arg3[%c0_14, %c0_15] : memref<64x64xbf16, #tpu.memory_space<vmem>>, vector<64x64xbf16>
    %c0_16 = arith.constant 0 : index
    %c0_17 = arith.constant 0 : index
    %29 = vector.load %arg11[%c0_16, %c0_17] : memref<16x8xf32, #tpu.memory_space<vmem>>, vector<16x8xf32>
    %cst_18 = arith.constant 0.000000e+00 : f32
    %30 = vector.broadcast %cst_18 : f32 to vector<8x64xf32>
    %31 = vector.extract_strided_slice %27 {offsets = [0, 64], sizes = [8, 16], strides = [1, 1]} : vector<8x128xbf16> to vector<8x16xbf16>
    %32 = vector.extract_strided_slice %27 {offsets = [0, 96], sizes = [8, 16], strides = [1, 1]} : vector<8x128xbf16> to vector<8x16xbf16>
    %33 = vector.extract_strided_slice %27 {offsets = [0, 0], sizes = [8, 16], strides = [1, 1]} : vector<8x128xbf16> to vector<8x16xbf16>
    %34 = vector.extract_strided_slice %27 {offsets = [0, 16], sizes = [8, 16], strides = [1, 1]} : vector<8x128xbf16> to vector<8x16xbf16>
    %35 = tpu.concatenate %33, %34 in 0 : vector<8x16xbf16>, vector<8x16xbf16> -> vector<16x16xbf16>
    %cst_19 = arith.constant dense<0.000000e+00> : vector<16x8xf32>
    %36 = tpu.matmul %35, %31, %cst_19 {dimension_numbers = #tpu.dot_dimension_numbers<[1], [1], [0], [0], [0, 0, 1, 0], [], []>} : vector<16x16xbf16>, vector<8x16xbf16>, vector<16x8xf32> -> vector<16x8xf32>
    %37 = arith.addf %36, %29 : vector<16x8xf32>
    %cst_20 = arith.constant dense<0xFF800000> : vector<16xf32>
    %38 = vector.multi_reduction <maximumf>, %37, %cst_20 [1] : vector<16x8xf32> to vector<16xf32>
    %39 = vector.shape_cast %38 : vector<16xf32> to vector<16x1xf32>
    %40 = vector.broadcast %39 : vector<16x1xf32> to vector<16x8xf32>
    %41 = arith.subf %37, %40 : vector<16x8xf32>
    %42 = math.exp %41 : vector<16x8xf32>
    %cst_21 = arith.constant dense<0.000000e+00> : vector<16xf32>
    %43 = vector.multi_reduction <add>, %42, %cst_21 [1] : vector<16x8xf32> to vector<16xf32>
    %44 = vector.shape_cast %43 : vector<16xf32> to vector<16x1xf32>
    %45 = tpu.reciprocal %44 {approx = true} : vector<16x1xf32> -> vector<16x1xf32>
    %46 = vector.broadcast %45 : vector<16x1xf32> to vector<16x8xf32>
    %47 = arith.mulf %42, %46 : vector<16x8xf32>
    %48 = arith.truncf %47 : vector<16x8xf32> to vector<16x8xbf16>
    %cst_22 = arith.constant dense<0.000000e+00> : vector<16x16xf32>
    %49 = tpu.matmul %48, %32, %cst_22 {dimension_numbers = #tpu.dot_dimension_numbers<[1], [0], [0], [1], [0, 0, 1, 1], [], []>} : vector<16x8xbf16>, vector<8x16xbf16>, vector<16x16xf32> -> vector<16x16xf32>
    %50 = arith.truncf %49 : vector<16x16xf32> to vector<16x16xbf16>
    %51 = vector.extract_strided_slice %50 {offsets = [0, 0], sizes = [8, 16], strides = [1, 1]} : vector<16x16xbf16> to vector<8x16xbf16>
    %52 = vector.extract_strided_slice %28 {offsets = [0, 0], sizes = [16, 64], strides = [1, 1]} : vector<64x64xbf16> to vector<16x64xbf16>
    %cst_23 = arith.constant dense<0.000000e+00> : vector<8x64xf32>
    %53 = tpu.matmul %51, %52, %cst_23 {dimension_numbers = #tpu.dot_dimension_numbers<[1], [0], [0], [1], [0, 0, 1, 1], [], []>} : vector<8x16xbf16>, vector<16x64xbf16>, vector<8x64xf32> -> vector<8x64xf32>
    %54 = arith.addf %30, %53 : vector<8x64xf32>
    %55 = vector.extract_strided_slice %50 {offsets = [8, 0], sizes = [8, 16], strides = [1, 1]} : vector<16x16xbf16> to vector<8x16xbf16>
    %56 = vector.extract_strided_slice %28 {offsets = [16, 0], sizes = [16, 64], strides = [1, 1]} : vector<64x64xbf16> to vector<16x64xbf16>
    %cst_24 = arith.constant dense<0.000000e+00> : vector<8x64xf32>
    %57 = tpu.matmul %55, %56, %cst_24 {dimension_numbers = #tpu.dot_dimension_numbers<[1], [0], [0], [1], [0, 0, 1, 1], [], []>} : vector<8x16xbf16>, vector<16x64xbf16>, vector<8x64xf32> -> vector<8x64xf32>
    %58 = arith.addf %54, %57 : vector<8x64xf32>
    %59 = vector.extract_strided_slice %27 {offsets = [0, 80], sizes = [8, 16], strides = [1, 1]} : vector<8x128xbf16> to vector<8x16xbf16>
    %60 = vector.extract_strided_slice %27 {offsets = [0, 112], sizes = [8, 16], strides = [1, 1]} : vector<8x128xbf16> to vector<8x16xbf16>
    %61 = vector.extract_strided_slice %27 {offsets = [0, 32], sizes = [8, 16], strides = [1, 1]} : vector<8x128xbf16> to vector<8x16xbf16>
    %62 = vector.extract_strided_slice %27 {offsets = [0, 48], sizes = [8, 16], strides = [1, 1]} : vector<8x128xbf16> to vector<8x16xbf16>
    %63 = tpu.concatenate %61, %62 in 0 : vector<8x16xbf16>, vector<8x16xbf16> -> vector<16x16xbf16>
    %cst_25 = arith.constant dense<0.000000e+00> : vector<16x8xf32>
    %64 = tpu.matmul %63, %59, %cst_25 {dimension_numbers = #tpu.dot_dimension_numbers<[1], [1], [0], [0], [0, 0, 1, 0], [], []>} : vector<16x16xbf16>, vector<8x16xbf16>, vector<16x8xf32> -> vector<16x8xf32>
    %65 = arith.addf %64, %29 : vector<16x8xf32>
    %cst_26 = arith.constant dense<0xFF800000> : vector<16xf32>
    %66 = vector.multi_reduction <maximumf>, %65, %cst_26 [1] : vector<16x8xf32> to vector<16xf32>
    %67 = vector.shape_cast %66 : vector<16xf32> to vector<16x1xf32>
    %68 = vector.broadcast %67 : vector<16x1xf32> to vector<16x8xf32>
    %69 = arith.subf %65, %68 : vector<16x8xf32>
    %70 = math.exp %69 : vector<16x8xf32>
    %cst_27 = arith.constant dense<0.000000e+00> : vector<16xf32>
    %71 = vector.multi_reduction <add>, %70, %cst_27 [1] : vector<16x8xf32> to vector<16xf32>
    %72 = vector.shape_cast %71 : vector<16xf32> to vector<16x1xf32>
    %73 = tpu.reciprocal %72 {approx = true} : vector<16x1xf32> -> vector<16x1xf32>
    %74 = vector.broadcast %73 : vector<16x1xf32> to vector<16x8xf32>
    %75 = arith.mulf %70, %74 : vector<16x8xf32>
    %76 = arith.truncf %75 : vector<16x8xf32> to vector<16x8xbf16>
    %cst_28 = arith.constant dense<0.000000e+00> : vector<16x16xf32>
    %77 = tpu.matmul %76, %60, %cst_28 {dimension_numbers = #tpu.dot_dimension_numbers<[1], [0], [0], [1], [0, 0, 1, 1], [], []>} : vector<16x8xbf16>, vector<8x16xbf16>, vector<16x16xf32> -> vector<16x16xf32>
    %78 = arith.truncf %77 : vector<16x16xf32> to vector<16x16xbf16>
    %79 = vector.extract_strided_slice %78 {offsets = [0, 0], sizes = [8, 16], strides = [1, 1]} : vector<16x16xbf16> to vector<8x16xbf16>
    %80 = vector.extract_strided_slice %28 {offsets = [32, 0], sizes = [16, 64], strides = [1, 1]} : vector<64x64xbf16> to vector<16x64xbf16>
    %cst_29 = arith.constant dense<0.000000e+00> : vector<8x64xf32>
    %81 = tpu.matmul %79, %80, %cst_29 {dimension_numbers = #tpu.dot_dimension_numbers<[1], [0], [0], [1], [0, 0, 1, 1], [], []>} : vector<8x16xbf16>, vector<16x64xbf16>, vector<8x64xf32> -> vector<8x64xf32>
    %82 = arith.addf %58, %81 : vector<8x64xf32>
    %83 = vector.extract_strided_slice %78 {offsets = [8, 0], sizes = [8, 16], strides = [1, 1]} : vector<16x16xbf16> to vector<8x16xbf16>
    %84 = vector.extract_strided_slice %28 {offsets = [48, 0], sizes = [16, 64], strides = [1, 1]} : vector<64x64xbf16> to vector<16x64xbf16>
    %cst_30 = arith.constant dense<0.000000e+00> : vector<8x64xf32>
    %85 = tpu.matmul %83, %84, %cst_30 {dimension_numbers = #tpu.dot_dimension_numbers<[1], [0], [0], [1], [0, 0, 1, 1], [], []>} : vector<8x16xbf16>, vector<16x64xbf16>, vector<8x64xf32> -> vector<8x64xf32>
    %86 = arith.addf %82, %85 : vector<8x64xf32>
    %87 = arith.addf %0, %86 : vector<8x64xf32>
    %88 = arith.mulf %87, %87 : vector<8x64xf32>
    %cst_31 = arith.constant dense<0.000000e+00> : vector<8xf32>
    %89 = vector.multi_reduction <add>, %88, %cst_31 [1] : vector<8x64xf32> to vector<8xf32>
    %90 = vector.shape_cast %89 : vector<8xf32> to vector<8x1xf32>
    %cst_32 = arith.constant 6.400000e+01 : f32
    %91 = vector.broadcast %cst_32 : f32 to vector<8x1xf32>
    %92 = arith.divf %90, %91 : vector<8x1xf32>
    %cst_33 = arith.constant 9.99999974E-6 : f32
    %93 = vector.broadcast %cst_33 : f32 to vector<8x1xf32>
    %94 = arith.addf %92, %93 : vector<8x1xf32>
    %95 = math.rsqrt %94 : vector<8x1xf32>
    %96 = vector.broadcast %95 : vector<8x1xf32> to vector<8x64xf32>
    %97 = arith.mulf %87, %96 : vector<8x64xf32>
    %c0_34 = arith.constant 0 : index
    %c0_35 = arith.constant 0 : index
    %98 = vector.load %arg7[%c0_34, %c0_35] : memref<1x64xf32, #tpu.memory_space<vmem>>, vector<1x64xf32>
    %99 = vector.broadcast %98 : vector<1x64xf32> to vector<8x64xf32>
    %100 = arith.mulf %97, %99 : vector<8x64xf32>
    %101 = arith.truncf %100 : vector<8x64xf32> to vector<8x64xbf16>
    %c0_36 = arith.constant 0 : index
    %c0_37 = arith.constant 0 : index
    %102 = vector.load %arg4[%c0_36, %c0_37] : memref<64x256xbf16, #tpu.memory_space<vmem>>, vector<64x256xbf16>
    %cst_38 = arith.constant dense<0.000000e+00> : vector<8x256xf32>
    %103 = tpu.matmul %101, %102, %cst_38 {dimension_numbers = #tpu.dot_dimension_numbers<[1], [0], [0], [1], [0, 0, 1, 1], [], []>} : vector<8x64xbf16>, vector<64x256xbf16>, vector<8x256xf32> -> vector<8x256xf32>
    %104 = vector.extract_strided_slice %103 {offsets = [0, 0], sizes = [8, 128], strides = [1, 1]} : vector<8x256xf32> to vector<8x128xf32>
    %105 = vector.extract_strided_slice %103 {offsets = [0, 128], sizes = [8, 128], strides = [1, 1]} : vector<8x256xf32> to vector<8x128xf32>
    %106 = arith.negf %104 : vector<8x128xf32>
    %107 = math.exp %106 : vector<8x128xf32>
    %cst_39 = arith.constant 1.000000e+00 : f32
    %108 = vector.broadcast %cst_39 : f32 to vector<8x128xf32>
    %109 = arith.addf %108, %107 : vector<8x128xf32>
    %110 = arith.divf %108, %109 : vector<8x128xf32>
    %111 = arith.mulf %104, %110 : vector<8x128xf32>
    %112 = arith.mulf %111, %105 : vector<8x128xf32>
    %113 = arith.truncf %112 : vector<8x128xf32> to vector<8x128xbf16>
    %c0_40 = arith.constant 0 : index
    %c0_41 = arith.constant 0 : index
    %114 = vector.load %arg5[%c0_40, %c0_41] : memref<128x64xbf16, #tpu.memory_space<vmem>>, vector<128x64xbf16>
    %cst_42 = arith.constant dense<0.000000e+00> : vector<8x64xf32>
    %115 = tpu.matmul %113, %114, %cst_42 {dimension_numbers = #tpu.dot_dimension_numbers<[1], [0], [0], [1], [0, 0, 1, 1], [], []>} : vector<8x128xbf16>, vector<128x64xbf16>, vector<8x64xf32> -> vector<8x64xf32>
    %116 = arith.addf %87, %115 : vector<8x64xf32>
    %cst_43 = arith.constant 0.000000e+00 : f32
    %117 = vector.broadcast %cst_43 : f32 to vector<8x64xf32>
    %118 = tpu.concatenate %116, %117 in 1 : vector<8x64xf32>, vector<8x64xf32> -> vector<8x128xf32>
    %c0_44 = arith.constant 0 : index
    %c0_45 = arith.constant 0 : index
    %119 = vector.load %arg12[%c0_44, %c0_45] : memref<8x128xf32, #tpu.memory_space<vmem>>, vector<8x128xf32>
    tpu.vector_store %arg12[%c0_44, %c0_45], %118 {strides = array<i32>} : memref<8x128xf32, #tpu.memory_space<vmem>>, vector<8x128xf32>,
    return
  }
  func.func @transform_0(%arg0: i32) -> (i32, i32) {
    %c0_i32 = arith.constant 0 : i32
    %c0_i32_0 = arith.constant 0 : i32
    return %arg0, %c0_i32 : i32, i32
  }
  func.func @transform_1(%arg0: i32) -> (i32, i32) {
    %c0_i32 = arith.constant 0 : i32
    %c0_i32_0 = arith.constant 0 : i32
    %c0_i32_1 = arith.constant 0 : i32
    return %c0_i32, %c0_i32_0 : i32, i32
  }
  func.func @transform_2(%arg0: i32) -> (i32, i32) {
    %c0_i32 = arith.constant 0 : i32
    %c0_i32_0 = arith.constant 0 : i32
    %c0_i32_1 = arith.constant 0 : i32
    return %c0_i32, %c0_i32_0 : i32, i32
  }
  func.func @transform_3(%arg0: i32) -> (i32, i32) {
    %c0_i32 = arith.constant 0 : i32
    %c0_i32_0 = arith.constant 0 : i32
    %c0_i32_1 = arith.constant 0 : i32
    return %c0_i32, %c0_i32_0 : i32, i32
  }
  func.func @transform_4(%arg0: i32) -> (i32, i32) {
    %c0_i32 = arith.constant 0 : i32
    %c0_i32_0 = arith.constant 0 : i32
    %c0_i32_1 = arith.constant 0 : i32
    return %c0_i32, %c0_i32_0 : i32, i32
  }
  func.func @transform_5(%arg0: i32) -> (i32, i32) {
    %c0_i32 = arith.constant 0 : i32
    %c0_i32_0 = arith.constant 0 : i32
    %c0_i32_1 = arith.constant 0 : i32
    return %c0_i32, %c0_i32_0 : i32, i32
  }
  func.func @transform_6(%arg0: i32) -> (i32, i32) {
    %c0_i32 = arith.constant 0 : i32
    %c0_i32_0 = arith.constant 0 : i32
    %c0_i32_1 = arith.constant 0 : i32
    return %c0_i32, %c0_i32_0 : i32, i32
  }
  func.func @transform_7(%arg0: i32) -> (i32, i32) {
    %c0_i32 = arith.constant 0 : i32
    %c0_i32_0 = arith.constant 0 : i32
    %c0_i32_1 = arith.constant 0 : i32
    return %c0_i32, %c0_i32_0 : i32, i32
  }
  func.func @transform_8(%arg0: i32) -> (i32, i32) {
    %c0_i32 = arith.constant 0 : i32
    %c0_i32_0 = arith.constant 0 : i32
    %c0_i32_1 = arith.constant 0 : i32
    return %c0_i32, %c0_i32_0 : i32, i32
  }
  func.func @transform_9(%arg0: i32) -> (i32, i32) {
    %c0_i32 = arith.constant 0 : i32
    %c0_i32_0 = arith.constant 0 : i32
    %c0_i32_1 = arith.constant 0 : i32
    return %c0_i32, %c0_i32_0 : i32, i32
  }
  func.func @transform_10(%arg0: i32) -> (i32, i32) {
    %c0_i32 = arith.constant 0 : i32
    %c0_i32_0 = arith.constant 0 : i32
    %c0_i32_1 = arith.constant 0 : i32
    return %c0_i32, %c0_i32_0 : i32, i32
  }
  func.func @transform_11(%arg0: i32) -> (i32, i32) {
    %c0_i32 = arith.constant 0 : i32
    %c0_i32_0 = arith.constant 0 : i32
    return %arg0, %c0_i32 : i32, i32
  }
}

</mosaic_0001>

<llo_original>
// kernel: tile.39
$region0: #{tile.39}
  %s0 = inlined_call_operand.vmem [shape: f32[8,2,16], index: 0, kind: input, shape index: {}]
  %s1 = inlined_call_operand.vmem [shape: f32[8,32], index: 1, kind: output, shape index: {}]
  $region1: #{tile.39} parent=0
    #allocation0 [shape = 'u8[32768]{0}', space=vmem, size = 0x8000, scoped, tag = 'scoped mem for input reshape']
    %s3 = sshllo.u32 0, 2
    %s4 = smul.addr 2, 7
    %s5 = scalar_lea.vmem %s0, %s4
    %v6 = vld [vmem:[%s5] sm:%s3]
    %s7 = scalar_lea.vmem [#allocation0], 56
    %8 = vst [vmem:[%s7] sm:%s3] %v6
    %s9 = smul.addr 2, 6
    %s10 = scalar_lea.vmem %s0, %s9
    %v11 = vld [vmem:[%s10] sm:%s3]
    %s12 = scalar_lea.vmem [#allocation0], 48
    %13 = vst [vmem:[%s12] sm:%s3] %v11
    %s14 = smul.addr 2, 5
    %s15 = scalar_lea.vmem %s0, %s14
    %v16 = vld [vmem:[%s15] sm:%s3]
    %s17 = scalar_lea.vmem [#allocation0], 40
    %18 = vst [vmem:[%s17] sm:%s3] %v16
    %s19 = smul.addr 2, 4
    %s20 = scalar_lea.vmem %s0, %s19
    %v21 = vld [vmem:[%s20] sm:%s3]
    %s22 = scalar_lea.vmem [#allocation0], 32
    %23 = vst [vmem:[%s22] sm:%s3] %v21
    %s24 = smul.addr 2, 3
    %s25 = scalar_lea.vmem %s0, %s24
    %v26 = vld [vmem:[%s25] sm:%s3]
    %s27 = scalar_lea.vmem [#allocation0], 24
    %28 = vst [vmem:[%s27] sm:%s3] %v26
    %s29 = smul.addr 2, 2
    %s30 = scalar_lea.vmem %s0, %s29
    %v31 = vld [vmem:[%s30] sm:%s3]
    %s32 = scalar_lea.vmem [#allocation0], 16
    %33 = vst [vmem:[%s32] sm:%s3] %v31
    %s34 = scalar_lea.vmem %s0, 2
    %v35 = vld [vmem:[%s34] sm:%s3]
    %s36 = scalar_lea.vmem [#allocation0], 8
    %37 = vst [vmem:[%s36] sm:%s3] %v35
    %v38 = vld [vmem:[%s0] sm:%s3]
    %39 = vst [vmem:[#allocation0] sm:%s3] %v38
    %v40 = vld [vmem:[#allocation0] ss:$8 sm:$0xf]
    %v41 = vld [vmem:[#allocation0] ss:$8 sm:$0xf0]
    %vm42 = vcmask 1047556
    %v43 = vsel %vm42, %v41, %v40
    %vm44 = vcmask 130048
    %45 = vst.msk [vmem:[%s1] sm:$0xff] %vm44, %v43
    %s46 = scalar_lea.vmem [#allocation0], 1
    %v47 = vld [vmem:[%s46] ss:$8 sm:$0xf]
    %s48 = scalar_lea.vmem [#allocation0], 1
    %v49 = vld [vmem:[%s48] ss:$8 sm:$0xf0]
    %vm50 = vcmask 1047556
    %v51 = vsel %vm50, %v49, %v47
    %52 = vrot.lane.b32.xlu0 %v51, 16
    %v53 = vpop.permute.xlu0 %52
    %vm54 = vcmask 261248
    %55 = vst.msk [vmem:[%s1] sm:$0xff] %vm54, %v53

// kernel: llama3_block.1
$region0: #{llama3_block.1}
  #allocation0 [shape = 'u32[]', space=smem, size = 0x4, offset = 0x4, fixed_abs, tag = 'smem constant byte address 0x4 - core index']
  #allocation1 [shape = 'u32[144,128]{1,0:T(1,128)}', space=vmem, size = 0x12000, scoped, tag = 'internal scratch']
  %s0 = inlined_call_operand.vmem [shape: f32[16,64], index: 0, kind: input, shape index: {}]
  %s1 = inlined_call_operand.vmem [shape: bf16[64,128], index: 1, kind: input, shape index: {}]
  %s2 = inlined_call_operand.vmem [shape: bf16[64,64], index: 2, kind: input, shape index: {}]
  %s3 = inlined_call_operand.vmem [shape: bf16[64,256], index: 3, kind: input, shape index: {}]
  %s4 = inlined_call_operand.vmem [shape: bf16[128,64], index: 4, kind: input, shape index: {}]
  %s5 = inlined_call_operand.vmem [shape: f32[1,64], index: 5, kind: input, shape index: {}]
  %s6 = inlined_call_operand.vmem [shape: f32[1,64], index: 6, kind: input, shape index: {}]
  %s7 = inlined_call_operand.vmem [shape: f32[8,128], index: 7, kind: input, shape index: {}]
  %s8 = inlined_call_operand.vmem [shape: f32[8,128], index: 8, kind: input, shape index: {}]
  %s9 = inlined_call_operand.vmem [shape: f32[8,128], index: 9, kind: input, shape index: {}]
  %s10 = inlined_call_operand.vmem [shape: f32[16,8], index: 10, kind: input, shape index: {}]
  %s11 = inlined_call_operand.hbm [shape: f32[16,128], index: 11, kind: output, shape index: {}]
  %s12 = sld [smem:[#allocation0]]
  $region77: #{llama3_block.1} parent=0
    _
  %s14 = ssub.s32 1, %s12
  %s15 = scalar_select 0, %s14, %s12
  $region1: #{llama3_block.1} parent=0
    #allocation2 [shape = 'u8[8192]{0}', space=vmem, size = 0x2000, scoped, tag = 'output window, operand 0']
    #allocation3 [shape = 's32[2]{0}', space=sflag, size = 0x8, scoped, tag = 'scoped memory for llama3_block.1']
    %16 = vsyncpa [#allocation3], 0
    %s17 = scalar_lea.sflag [#allocation3], 1
    %18 = vsyncpa %s17, 0
    loop: start=0, step=1, limit=4
    $region2: #{llama3_block.1} parent=1 // loop_pre_header
      _
    $region3: #{llama3_block.1} parent=1 // loop_header
      %s20 = sphi 0, %s24
      %p21 = scmp.ge.s32.totalorder %s20, 4
      %s30 = sphi 0, %s32
      %s33 = sphi 0, %s30
      %s34 = sphi 0, %s33
      %s50 = sphi 0, %s34
      %s54 = sphi 0, %s54
      %s56 = sphi 0, %s54
      %s57 = sphi 0, %s56
      %s71 = sphi 0, %s57
      %s75 = sphi 0, %s75
      %s77 = sphi 0, %s75
      %s78 = sphi 0, %s77
      %s92 = sphi 0, %s78
      %s96 = sphi 0, %s96
      %s98 = sphi 0, %s96
      %s99 = sphi 0, %s98
      %s113 = sphi 0, %s99
      %s117 = sphi 0, %s117
      %s119 = sphi 0, %s117
      %s120 = sphi 0, %s119
      %s134 = sphi 0, %s120
      %s138 = sphi 0, %s138
      %s140 = sphi 0, %s138
      %s141 = sphi 0, %s140
      %s155 = sphi 0, %s141
      %s159 = sphi 0, %s159
      %s161 = sphi 0, %s159
      %s162 = sphi 0, %s161
      %s176 = sphi 0, %s162
      %s180 = sphi 0, %s180
      %s182 = sphi 0, %s180
      %s183 = sphi 0, %s182
      %s197 = sphi 0, %s183
      %s201 = sphi 0, %s201
      %s203 = sphi 0, %s201
      %s204 = sphi 0, %s203
      %s218 = sphi 0, %s204
      %s222 = sphi 0, %s222
      %s224 = sphi 0, %s222
      %s225 = sphi 0, %s224
      %s239 = sphi 0, %s225
      %s243 = sphi 0, %s243
      %s245 = sphi 0, %s243
      %s246 = sphi 0, %s245
      %s260 = sphi 0, %s246
      %s266 = sphi 0, %s268
      %s269 = sphi 0, %s266
      %s270 = sphi 0, %s269
      %s286 = sphi 0, %s270
    $region4: #{llama3_block.1} parent=1 // loop_header_branch
      %23 = sbr.rel (%p21) target = $region8
    $region5: #{llama3_block.1} parent=1 // loop_body
      %s25 = ssub.s32 %s20, 1
      %s26 = ssub.s32 %s20, 2
      %s27 = sadd.s32 %s20, 1
      %s28 = ssub.s32 %s20, %s27
      %p29 = scmp.eq.s32.totalorder %s28, 0
      %s31 = sadd.s32 %s30, 1
      %s32 = scalar_select %p29, %s30, %s31
      %p35 = pneg %p29
      %p36 = scmp.eq.s32.totalorder %s20, 1
      %p37 = por %p35, %p36
      %p38 = scmp.ne.s32.totalorder %s30, %s33
      %p39 = scmp.eq.s32.totalorder %s20, 0
      %p40 = por %p38, %p39
      %p41 = scmp.ne.s32.totalorder %s30, %s33
      %p42 = scmp.eq.s32.totalorder %s25, 1
      %p43 = por %p41, %p42
      %p44 = scmp.ne.s32.totalorder %s33, %s34
      %p45 = scmp.eq.s32.totalorder %s25, 0
      %p46 = por %p44, %p45
      %p47 = scmp.ne.s32.totalorder %s33, %s34
      %p48 = scmp.eq.s32.totalorder %s26, 1
      %p49 = por %p47, %p48
      %p51 = scmp.ne.s32.totalorder %s34, %s50
      %p52 = scmp.eq.s32.totalorder %s26, 0
      %p53 = por %p51, %p52
      %s55 = sadd.s32 %s54, 1
      %p58 = scmp.eq.s32.totalorder %s20, 1
      %p59 = scmp.ne.s32.totalorder %s54, %s56
      %p60 = scmp.eq.s32.totalorder %s20, 0
      %p61 = por %p59, %p60
      %p62 = scmp.ne.s32.totalorder %s54, %s56
      %p63 = scmp.eq.s32.totalorder %s25, 1
      %p64 = por %p62, %p63
      %p65 = scmp.ne.s32.totalorder %s56, %s57
      %p66 = scmp.eq.s32.totalorder %s25, 0
      %p67 = por %p65, %p66
      %p68 = scmp.ne.s32.totalorder %s56, %s57
      %p69 = scmp.eq.s32.totalorder %s26, 1
      %p70 = por %p68, %p69
      %p72 = scmp.ne.s32.totalorder %s57, %s71
      %p73 = scmp.eq.s32.totalorder %s26, 0
      %p74 = por %p72, %p73
      %s76 = sadd.s32 %s75, 1
      %p79 = scmp.eq.s32.totalorder %s20, 1
      %p80 = scmp.ne.s32.totalorder %s75, %s77
      %p81 = scmp.eq.s32.totalorder %s20, 0
      %p82 = por %p80, %p81
      %p83 = scmp.ne.s32.totalorder %s75, %s77
      %p84 = scmp.eq.s32.totalorder %s25, 1
      %p85 = por %p83, %p84
      %p86 = scmp.ne.s32.totalorder %s77, %s78
      %p87 = scmp.eq.s32.totalorder %s25, 0
      %p88 = por %p86, %p87
      %p89 = scmp.ne.s32.totalorder %s77, %s78
      %p90 = scmp.eq.s32.totalorder %s26, 1
      %p91 = por %p89, %p90
      %p93 = scmp.ne.s32.totalorder %s78, %s92
      %p94 = scmp.eq.s32.totalorder %s26, 0
      %p95 = por %p93, %p94
      %s97 = sadd.s32 %s96, 1
      %p100 = scmp.eq.s32.totalorder %s20, 1
      %p101 = scmp.ne.s32.totalorder %s96, %s98
      %p102 = scmp.eq.s32.totalorder %s20, 0
      %p103 = por %p101, %p102
      %p104 = scmp.ne.s32.totalorder %s96, %s98
      %p105 = scmp.eq.s32.totalorder %s25, 1
      %p106 = por %p104, %p105
      %p107 = scmp.ne.s32.totalorder %s98, %s99
      %p108 = scmp.eq.s32.totalorder %s25, 0
      %p109 = por %p107, %p108
      %p110 = scmp.ne.s32.totalorder %s98, %s99
      %p111 = scmp.eq.s32.totalorder %s26, 1
      %p112 = por %p110, %p111
      %p114 = scmp.ne.s32.totalorder %s99, %s113
      %p115 = scmp.eq.s32.totalorder %s26, 0
      %p116 = por %p114, %p115
      %s118 = sadd.s32 %s117, 1
      %p121 = scmp.eq.s32.totalorder %s20, 1
      %p122 = scmp.ne.s32.totalorder %s117, %s119
      %p123 = scmp.eq.s32.totalorder %s20, 0
      %p124 = por %p122, %p123
      %p125 = scmp.ne.s32.totalorder %s117, %s119
      %p126 = scmp.eq.s32.totalorder %s25, 1
      %p127 = por %p125, %p126
      %p128 = scmp.ne.s32.totalorder %s119, %s120
      %p129 = scmp.eq.s32.totalorder %s25, 0
      %p130 = por %p128, %p129
      %p131 = scmp.ne.s32.totalorder %s119, %s120
      %p132 = scmp.eq.s32.totalorder %s26, 1
      %p133 = por %p131, %p132
      %p135 = scmp.ne.s32.totalorder %s120, %s134
      %p136 = scmp.eq.s32.totalorder %s26, 0
      %p137 = por %p135, %p136
      %s139 = sadd.s32 %s138, 1
      %p142 = scmp.eq.s32.totalorder %s20, 1
      %p143 = scmp.ne.s32.totalorder %s138, %s140
      %p144 = scmp.eq.s32.totalorder %s20, 0
      %p145 = por %p143, %p144
      %p146 = scmp.ne.s32.totalorder %s138, %s140
      %p147 = scmp.eq.s32.totalorder %s25, 1
      %p148 = por %p146, %p147
      %p149 = scmp.ne.s32.totalorder %s140, %s141
      %p150 = scmp.eq.s32.totalorder %s25, 0
      %p151 = por %p149, %p150
      %p152 = scmp.ne.s32.totalorder %s140, %s141
      %p153 = scmp.eq.s32.totalorder %s26, 1
      %p154 = por %p152, %p153
      %p156 = scmp.ne.s32.totalorder %s141, %s155
      %p157 = scmp.eq.s32.totalorder %s26, 0
      %p158 = por %p156, %p157
      %s160 = sadd.s32 %s159, 1
      %p163 = scmp.eq.s32.totalorder %s20, 1
      %p164 = scmp.ne.s32.totalorder %s159, %s161
      %p165 = scmp.eq.s32.totalorder %s20, 0
      %p166 = por %p164, %p165
      %p167 = scmp.ne.s32.totalorder %s159, %s161
      %p168 = scmp.eq.s32.totalorder %s25, 1
      %p169 = por %p167, %p168
      %p170 = scmp.ne.s32.totalorder %s161, %s162
      %p171 = scmp.eq.s32.totalorder %s25, 0
      %p172 = por %p170, %p171
      %p173 = scmp.ne.s32.totalorder %s161, %s162
      %p174 = scmp.eq.s32.totalorder %s26, 1
      %p175 = por %p173, %p174
      %p177 = scmp.ne.s32.totalorder %s162, %s176
      %p178 = scmp.eq.s32.totalorder %s26, 0
      %p179 = por %p177, %p178
      %s181 = sadd.s32 %s180, 1
      %p184 = scmp.eq.s32.totalorder %s20, 1
      %p185 = scmp.ne.s32.totalorder %s180, %s182
      %p186 = scmp.eq.s32.totalorder %s20, 0
      %p187 = por %p185, %p186
      %p188 = scmp.ne.s32.totalorder %s180, %s182
      %p189 = scmp.eq.s32.totalorder %s25, 1
      %p190 = por %p188, %p189
      %p191 = scmp.ne.s32.totalorder %s182, %s183
      %p192 = scmp.eq.s32.totalorder %s25, 0
      %p193 = por %p191, %p192
      %p194 = scmp.ne.s32.totalorder %s182, %s183
      %p195 = scmp.eq.s32.totalorder %s26, 1
      %p196 = por %p194, %p195
      %p198 = scmp.ne.s32.totalorder %s183, %s197
      %p199 = scmp.eq.s32.totalorder %s26, 0
      %p200 = por %p198, %p199
      %s202 = sadd.s32 %s201, 1
      %p205 = scmp.eq.s32.totalorder %s20, 1
      %p206 = scmp.ne.s32.totalorder %s201, %s203
      %p207 = scmp.eq.s32.totalorder %s20, 0
      %p208 = por %p206, %p207
      %p209 = scmp.ne.s32.totalorder %s201, %s203
      %p210 = scmp.eq.s32.totalorder %s25, 1
      %p211 = por %p209, %p210
      %p212 = scmp.ne.s32.totalorder %s203, %s204
      %p213 = scmp.eq.s32.totalorder %s25, 0
      %p214 = por %p212, %p213
      %p215 = scmp.ne.s32.totalorder %s203, %s204
      %p216 = scmp.eq.s32.totalorder %s26, 1
      %p217 = por %p215, %p216
      %p219 = scmp.ne.s32.totalorder %s204, %s218
      %p220 = scmp.eq.s32.totalorder %s26, 0
      %p221 = por %p219, %p220
      %s223 = sadd.s32 %s222, 1
      %p226 = scmp.eq.s32.totalorder %s20, 1
      %p227 = scmp.ne.s32.totalorder %s222, %s224
      %p228 = scmp.eq.s32.totalorder %s20, 0
      %p229 = por %p227, %p228
      %p230 = scmp.ne.s32.totalorder %s222, %s224
      %p231 = scmp.eq.s32.totalorder %s25, 1
      %p232 = por %p230, %p231
      %p233 = scmp.ne.s32.totalorder %s224, %s225
      %p234 = scmp.eq.s32.totalorder %s25, 0
      %p235 = por %p233, %p234
      %p236 = scmp.ne.s32.totalorder %s224, %s225
      %p237 = scmp.eq.s32.totalorder %s26, 1
      %p238 = por %p236, %p237
      %p240 = scmp.ne.s32.totalorder %s225, %s239
      %p241 = scmp.eq.s32.totalorder %s26, 0
      %p242 = por %p240, %p241
      %s244 = sadd.s32 %s243, 1
      %p247 = scmp.eq.s32.totalorder %s20, 1
      %p248 = scmp.ne.s32.totalorder %s243, %s245
      %p249 = scmp.eq.s32.totalorder %s20, 0
      %p250 = por %p248, %p249
      %p251 = scmp.ne.s32.totalorder %s243, %s245
      %p252 = scmp.eq.s32.totalorder %s25, 1
      %p253 = por %p251, %p252
      %p254 = scmp.ne.s32.totalorder %s245, %s246
      %p255 = scmp.eq.s32.totalorder %s25, 0
      %p256 = por %p254, %p255
      %p257 = scmp.ne.s32.totalorder %s245, %s246
      %p258 = scmp.eq.s32.totalorder %s26, 1
      %p259 = por %p257, %p258
      %p261 = scmp.ne.s32.totalorder %s246, %s260
      %p262 = scmp.eq.s32.totalorder %s26, 0
      %p263 = por %p261, %p262
      %s264 = ssub.s32 %s20, %s27
      %p265 = scmp.eq.s32.totalorder %s264, 0
      %s267 = sadd.s32 %s266, 1
      %s268 = scalar_select %p265, %s266, %s267
      %p271 = pneg %p265
      %p272 = scmp.eq.s32.totalorder %s20, 1
      %p273 = por %p271, %p272
      %p274 = scmp.ne.s32.totalorder %s266, %s269
      %p275 = scmp.eq.s32.totalorder %s20, 0
      %p276 = por %p274, %p275
      %p277 = scmp.ne.s32.totalorder %s266, %s269
      %p278 = scmp.eq.s32.totalorder %s25, 1
      %p279 = por %p277, %p278
      %p280 = scmp.ne.s32.totalorder %s269, %s270
      %p281 = scmp.eq.s32.totalorder %s25, 0
      %p282 = por %p280, %p281
      %p283 = scmp.ne.s32.totalorder %s269, %s270
      %p284 = scmp.eq.s32.totalorder %s26, 1
      %p285 = por %p283, %p284
      %p287 = scmp.ne.s32.totalorder %s270, %s286
      %p288 = scmp.eq.s32.totalorder %s26, 0
      %p289 = por %p287, %p288
      %p290 = scmp.le.s32.totalorder 1, %s20
      %p291 = scmp.lt.s32.totalorder %s20, 3
      %p292 = pnand %p290, %p291
      %p293 = pneg %p292
      // Predicated region
      $region9: #{llama3_block.1} parent=5 // pred_check
        _
      $region10: #{llama3_block.1} parent=5 // pred_check_branch
        %295 = sbr.rel (%p292) target = $region12
      $region11: #{llama3_block.1} parent=5 // pred_region
        %s296 = ssub.s32 %s20, 1
        // Predicated region
        $region13: #{llama3_block.1} parent=11 // pred_check
          %p297 = pneg %p67
        $region14: #{llama3_block.1} parent=11 // pred_check_branch
          %299 = sbr.rel (%p297) target = $region16
        $region15: #{llama3_block.1} parent=11 // pred_region
          _
        $region16: #{llama3_block.1} parent=11 // pred_fallthru
          _
        // Predicated region
        $region17: #{llama3_block.1} parent=11 // pred_check
          %p300 = pneg %p88
        $region18: #{llama3_block.1} parent=11 // pred_check_branch
          %302 = sbr.rel (%p300) target = $region20
        $region19: #{llama3_block.1} parent=11 // pred_region
          _
        $region20: #{llama3_block.1} parent=11 // pred_fallthru
          _
        // Predicated region
        $region21: #{llama3_block.1} parent=11 // pred_check
          %p303 = pneg %p109
        $region22: #{llama3_block.1} parent=11 // pred_check_branch
          %305 = sbr.rel (%p303) target = $region24
        $region23: #{llama3_block.1} parent=11 // pred_region
          _
        $region24: #{llama3_block.1} parent=11 // pred_fallthru
          _
        // Predicated region
        $region25: #{llama3_block.1} parent=11 // pred_check
          %p306 = pneg %p130
        $region26: #{llama3_block.1} parent=11 // pred_check_branch
          %308 = sbr.rel (%p306) target = $region28
        $region27: #{llama3_block.1} parent=11 // pred_region
          _
        $region28: #{llama3_block.1} parent=11 // pred_fallthru
          _
        // Predicated region
        $region29: #{llama3_block.1} parent=11 // pred_check
          %p309 = pneg %p151
        $region30: #{llama3_block.1} parent=11 // pred_check_branch
          %311 = sbr.rel (%p309) target = $region32
        $region31: #{llama3_block.1} parent=11 // pred_region
          _
        $region32: #{llama3_block.1} parent=11 // pred_fallthru
          _
        // Predicated region
        $region33: #{llama3_block.1} parent=11 // pred_check
          %p312 = pneg %p172
        $region34: #{llama3_block.1} parent=11 // pred_check_branch
          %314 = sbr.rel (%p312) target = $region36
        $region35: #{llama3_block.1} parent=11 // pred_region
          _
        $region36: #{llama3_block.1} parent=11 // pred_fallthru
          _
        // Predicated region
        $region37: #{llama3_block.1} parent=11 // pred_check
          %p315 = pneg %p193
        $region38: #{llama3_block.1} parent=11 // pred_check_branch
          %317 = sbr.rel (%p315) target = $region40
        $region39: #{llama3_block.1} parent=11 // pred_region
          _
        $region40: #{llama3_block.1} parent=11 // pred_fallthru
          _
        // Predicated region
        $region41: #{llama3_block.1} parent=11 // pred_check
          %p318 = pneg %p214
        $region42: #{llama3_block.1} parent=11 // pred_check_branch
          %320 = sbr.rel (%p318) target = $region44
        $region43: #{llama3_block.1} parent=11 // pred_region
          _
        $region44: #{llama3_block.1} parent=11 // pred_fallthru
          _
        // Predicated region
        $region45: #{llama3_block.1} parent=11 // pred_check
          %p321 = pneg %p235
        $region46: #{llama3_block.1} parent=11 // pred_check_branch
          %323 = sbr.rel (%p321) target = $region48
        $region47: #{llama3_block.1} parent=11 // pred_region
          _
        $region48: #{llama3_block.1} parent=11 // pred_fallthru
          _
        // Predicated region
        $region49: #{llama3_block.1} parent=11 // pred_check
          %p324 = pneg %p256
        $region50: #{llama3_block.1} parent=11 // pred_check_branch
          %326 = sbr.rel (%p324) target = $region52
        $region51: #{llama3_block.1} parent=11 // pred_region
          _
        $region52: #{llama3_block.1} parent=11 // pred_fallthru
          _
      $region12: #{llama3_block.1} parent=5 // pred_fallthru
        _
      %p327 = scmp.lt.s32.totalorder %s20, 2
      // Predicated region
      $region53: #{llama3_block.1} parent=5 // pred_check
        %p328 = pneg %p327
      $region54: #{llama3_block.1} parent=5 // pred_check_branch
        %330 = sbr.rel (%p328) target = $region56
      $region55: #{llama3_block.1} parent=5 // pred_region
        // Predicated region
        $region57: #{llama3_block.1} parent=55 // pred_check
          %p331 = pneg %p40
        $region58: #{llama3_block.1} parent=55 // pred_check_branch
          %333 = sbr.rel (%p331) target = $region60
        $region59: #{llama3_block.1} parent=55 // pred_region
          %p334 = scmp.lt.s32.totalorder %s20, 1
          %s335 = scalar_select %p334, %s20, 1
          %s336 = smul.addr %s335, 8
          %s337 = scalar_lea.vmem %s0, %s336
        $region60: #{llama3_block.1} parent=55 // pred_fallthru
          _
      $region56: #{llama3_block.1} parent=5 // pred_fallthru
        _
      %p338 = scmp.le.s32.totalorder 1, %s20
      %p339 = scmp.lt.s32.totalorder %s20, 3
      %p340 = pnand %p338, %p339
      %p341 = pneg %p340
      // Predicated region
      $region61: #{llama3_block.1} parent=5 // pred_check
        _
      $region62: #{llama3_block.1} parent=5 // pred_check_branch
        %343 = sbr.rel (%p340) target = $region64
      $region63: #{llama3_block.1} parent=5 // pred_region
        %s344 = ssub.s32 %s20, 1
        %p345 = scmp.lt.s32.totalorder %s25, 1
        %s346 = scalar_select %p345, %s25, 1
        %s347 = smul.addr %s346, 8
        %s348 = scalar_lea.vmem %s0, %s347
        %p349 = pneg %p46
        %p350 = pneg %p43
        %p351 = pneg %p67
        %p352 = pneg %p64
        %p353 = pneg %p88
        %p354 = pneg %p85
        %p355 = pneg %p109
        %p356 = pneg %p106
        %p357 = pneg %p130
        %p358 = pneg %p127
        %p359 = pneg %p151
        %p360 = pneg %p148
        %p361 = pneg %p172
        %p362 = pneg %p169
        %p363 = pneg %p193
        %p364 = pneg %p190
        %p365 = pneg %p214
        %p366 = pneg %p211
        %p367 = pneg %p235
        %p368 = pneg %p232
        %p369 = pneg %p256
        %p370 = pneg %p253
        %p371 = pneg %p282
        %p372 = pneg %p279
        %s373 = sand.u32 %s269, 1
        %s374 = scalar_lea.sflag [#allocation3], %s373
        %s375 = sand.u32 %s269, 1
        %s376 = smul.addr %s375, 8
        %s377 = scalar_lea.vmem [#allocation2], %s376
        %p378 = scmp.lt.s32.totalorder %s25, 1
        %s379 = scalar_select %p378, %s25, 1
        %s380 = smul.addr %s379, 8
        %s381 = scalar_lea.vmem %s0, %s380
        %v383 = vld [vmem:[%s381] sm:$0xff]
        %v384 = vmul.f32 %v383, %v383
        %vm385 = vcmask 523264
        %v386 = vsel %vm385, %v384, 0.0
        %387 = vadd.xlane.f32.xlu0 %v386
        %v388 = vpop.xlane.xlu0 %387
        %v389 = vrcp.pop 64.0
        %v390 = vmul.f32 %v388, %v389
        %v391 = vadd.f32 %v390, 1e-05
        %v392 = vrsqrt.pop %v391
        %v393 = vmul.f32 %v383, %v392
        %v394 = vld [vmem:[%s5] sm:$0x1]
        %v396 = vlaneseq
        %v397 = vshrl.u32 %v396, 7
        %v398 = vsub.s32 0, %v397
        %v399 = vrot.slane %v394, %v398
        %v401 = vmul.f32 %v393, %v399
        %v402 = vpack.c.bf16 %v401, %v401
        %v403 = vld [vmem:[%s1] sm:$0xf]
        %v404 = vld [vmem:[%s1 + $0x4] sm:$0xf]
        %v405 = vld [vmem:[%s1 + $0x8] sm:$0xf]
        %v406 = vld [vmem:[%s1 + $0xc] sm:$0xf]
        %v407 = vld [vmem:[%s1 + $0x10] sm:$0xf]
        %v408 = vld [vmem:[%s1 + $0x14] sm:$0xf]
        %v409 = vld [vmem:[%s1 + $0x18] sm:$0xf]
        %v410 = vld [vmem:[%s1 + $0x1c] sm:$0xf]
        %v419 = vunpack.c.l.b16 %v403
        %v420 = vunpack.c.l.b16 %v404
        %v421 = vunpack.c.l.b16 %v405
        %v422 = vunpack.c.l.b16 %v406
        %v423 = vunpack.c.l.b16 %v407
        %v424 = vunpack.c.l.b16 %v408
        %v425 = vunpack.c.l.b16 %v409
        %v426 = vunpack.c.l.b16 %v410
        %v427 = vpack.c.b16 %v420, %v419
        %v428 = vpack.c.b16 %v422, %v421
        %v429 = vpack.c.b16 %v424, %v423
        %v430 = vpack.c.b16 %v426, %v425
        %v436 = vsel %vm385, %v402, 0
        %438 = vmatprep.subr.bf16.mxu0 0
        %439 = vmatpush1.bf16.msra.mxu0 %v427
        %440 = vmatprep.subr.bf16.mxu0 0
        %441 = vmatpush1.bf16.msra.mxu0 %v428
        %442 = vmatprep.subr.bf16.mxu0 0
        %443 = vmatpush1.bf16.msra.mxu0 %v429
        %444 = vmatprep.subr.bf16.mxu0 0
        %445 = vmatpush1.bf16.msra.mxu0 %v430
        %446 = vmatprep.subr.bf16.mxu0 0
        %447 = vmatpush1.bf16.msra.mxu0 0
        %448 = vmatprep.subr.bf16.mxu0 0
        %449 = vmatpush1.bf16.msra.mxu0 0
        %450 = vmatprep.subr.bf16.mxu0 0
        %451 = vmatpush1.bf16.msra.mxu0 0
        %452 = vmatprep.subr.bf16.mxu0 0
        %453 = vmatpush1.bf16.msra.mxu0 0
        %454 = vmatprep.subr.bf16.mxu0 0
        %455 = vmatpush1.bf16.msra.mxu0 0
        %456 = vmatprep.subr.bf16.mxu0 0
        %457 = vmatpush1.bf16.msra.mxu0 0
        %458 = vmatprep.subr.bf16.mxu0 0
        %459 = vmatpush1.bf16.msra.mxu0 0
        %460 = vmatprep.subr.bf16.mxu0 0
        %461 = vmatpush1.bf16.msra.mxu0 0
        %462 = vmatprep.subr.bf16.mxu0 0
        %463 = vmatpush1.bf16.msra.mxu0 0
        %464 = vmatprep.subr.bf16.mxu0 0
        %465 = vmatpush1.bf16.msra.mxu0 0
        %466 = vmatprep.subr.bf16.mxu0 0
        %467 = vmatpush1.bf16.msra.mxu0 0
        %468 = vmatprep.subr.bf16.mxu0 0
        %469 = vmatpush1.bf16.msra.mxu0 0
        %470 = vmatprep.mubr.bf16.mxu0 0
        %471 = vmatmul.mubr.bf16.gmra.mrb[0].mxu0 %v436
        %v472 = vpop.f32.mrb[0].mxu0
        %v473 = vadd.f32 0.0, %v472
        %v474 = vpop.f32.mrb[0].mxu0
        %v475 = vpop.f32.mrb[0].mxu0
        %v476 = vpop.f32.mrb[0].mxu0
        %477 = vdwg.mxu0
        %478 = vrot.lane.b32.xlu0 %v473, 120
        %v479 = vpop.permute.xlu0 %478
        %480 = vrot.lane.b32.xlu0 %v473, 8
        %v481 = vpop.permute.xlu0 %480
        %v482 = vld [vmem:[%s7] sm:$0xff]
        %v483 = vmul.f32 %v473, %v482
        %v484 = vld [vmem:[%s8] sm:$0xff]
        %v485 = vmul.f32 %v479, %v484
        %v486 = vadd.f32 %v483, %v485
        %v487 = vld [vmem:[%s9] sm:$0xff]
        %v488 = vmul.f32 %v481, %v487
        %v489 = vadd.f32 %v486, %v488
        %v490 = vpack.c.bf16 %v489, %v489
        %v491 = vld [vmem:[%s2] sm:$0xf]
        %v492 = vld [vmem:[%s2 + $0x4] sm:$0xf]
        %v493 = vld [vmem:[%s2 + $0x8] sm:$0xf]
        %v494 = vld [vmem:[%s2 + $0xc] sm:$0xf]
        %v495 = vld [vmem:[%s2 + $0x10] sm:$0xf]
        %v496 = vld [vmem:[%s2 + $0x14] sm:$0xf]
        %v497 = vld [vmem:[%s2 + $0x18] sm:$0xf]
        %v498 = vld [vmem:[%s2 + $0x1c] sm:$0xf]
        %v499 = vld [vmem:[%s10] sm:$0xff]
        %v500 = vld [vmem:[%s10 + $0x8] sm:$0xff]
        %v502 = vrot.slane %v490, 4
        %503 = vrot.lane.b32.xlu0 %v502, 112
        %v504 = vpop.permute.xlu0 %503
        %vm505 = vcmask 1043456
        %v508 = vsel %vm505, %v490, %v504
        %509 = vrot.lane.b32.xlu0 %v490, 64
        %v510 = vpop.permute.xlu0 %509
        %vm511 = vcmask 130048
        %v512 = vsel %vm511, %v508, 0
        %v515 = vsel %vm511, %v510, 0
        %517 = vmatprep.subr.bf16.mxu0 0
        %518 = vmatpush1.bf16.xpose.msra.mxu0 %v515
        %519 = vmatprep.subr.bf16.mxu0 0
        %520 = vmatpush1.bf16.xpose.msra.mxu0 0
        %521 = vmatprep.subr.bf16.mxu0 0
        %522 = vmatpush1.bf16.xpose.msra.mxu0 0
        %523 = vmatprep.subr.bf16.mxu0 0
        %524 = vmatpush1.bf16.xpose.msra.mxu0 0
        %525 = vmatprep.subr.bf16.mxu0 0
        %526 = vmatpush1.bf16.xpose.msra.mxu0 0
        %527 = vmatprep.subr.bf16.mxu0 0
        %528 = vmatpush1.bf16.xpose.msra.mxu0 0
        %529 = vmatprep.subr.bf16.mxu0 0
        %530 = vmatpush1.bf16.xpose.msra.mxu0 0
        %531 = vmatprep.subr.bf16.mxu0 0
        %532 = vmatpush1.bf16.xpose.msra.mxu0 0
        %533 = vmatprep.subr.bf16.mxu0 0
        %534 = vmatpush1.bf16.xpose.msra.mxu0 0
        %535 = vmatprep.subr.bf16.mxu0 0
        %536 = vmatpush1.bf16.xpose.msra.mxu0 0
        %537 = vmatprep.subr.bf16.mxu0 0
        %538 = vmatpush1.bf16.xpose.msra.mxu0 0
        %539 = vmatprep.subr.bf16.mxu0 0
        %540 = vmatpush1.bf16.xpose.msra.mxu0 0
        %541 = vmatprep.subr.bf16.mxu0 0
        %542 = vmatpush1.bf16.xpose.msra.mxu0 0
        %543 = vmatprep.subr.bf16.mxu0 0
        %544 = vmatpush1.bf16.xpose.msra.mxu0 0
        %545 = vmatprep.subr.bf16.mxu0 0
        %546 = vmatpush1.bf16.xpose.msra.mxu0 0
        %547 = vmatprep.subr.bf16.mxu0 0
        %548 = vmatpush1.bf16.xpose.msra.mxu0 0
        %549 = vmatprep.mubr.bf16.mxu0 0
        %550 = vmatmul.mubr.bf16.gmra.mrb[0].mxu0 %v512
        %v551 = vpop.f32.mrb[0].mxu0
        %v552 = vadd.f32 %v499, %v551
        %v553 = vpop.f32.mrb[0].mxu0
        %v554 = vpop.f32.mrb[0].mxu0
        %v555 = vadd.f32 %v500, %v554
        %v556 = vpop.f32.mrb[0].mxu0
        %557 = vdwg.mxu0
        %vm558 = vcmask 64512
        %v559 = vsel %vm558, %v552, -inf
        %560 = vmax.xlane.f32.xlu0 %v559
        %v561 = vpop.xlane.xlu0 %560
        %v562 = vsel %vm558, %v555, -inf
        %563 = vmax.xlane.f32.xlu0 %v562
        %v564 = vpop.xlane.xlu0 %563
        %v565 = vsub.f32 %v552, %v561
        %v566 = vsub.f32 %v555, %v564
        %v567 = vmul.f32 %v565, 1.442695
        %v568 = vpow.pop %v567
        %v569 = vmul.f32 %v566, 1.442695
        %v570 = vpow.pop %v569
        %v571 = vsel %vm558, %v568, 0.0
        %572 = vadd.xlane.f32.xlu0 %v571
        %v573 = vpop.xlane.xlu0 %572
        %v574 = vsel %vm558, %v570, 0.0
        %575 = vadd.xlane.f32.xlu0 %v574
        %v576 = vpop.xlane.xlu0 %575
        %v577 = vrcp.pop %v573
        %v578 = vrcp.pop %v576
        %v579 = vmul.f32 %v568, %v577
        %v580 = vmul.f32 %v570, %v578
        %v581 = vpack.c.bf16 %v580, %v579
        %582 = vrot.lane.b32.xlu0 %v490, 32
        %v583 = vpop.permute.xlu0 %582
        %v585 = vsel %vm558, %v581, 0
        %v588 = vsel %vm505, %v583, 0
        %590 = vmatprep.subr.bf16.mxu0 0
        %591 = vmatpush1.bf16.msra.mxu0 %v588
        %592 = vmatprep.subr.bf16.mxu0 0
        %593 = vmatpush1.bf16.msra.mxu0 0
        %594 = vmatprep.subr.bf16.mxu0 0
        %595 = vmatpush1.bf16.msra.mxu0 0
        %596 = vmatprep.subr.bf16.mxu0 0
        %597 = vmatpush1.bf16.msra.mxu0 0
        %598 = vmatprep.subr.bf16.mxu0 0
        %599 = vmatpush1.bf16.msra.mxu0 0
        %600 = vmatprep.subr.bf16.mxu0 0
        %601 = vmatpush1.bf16.msra.mxu0 0
        %602 = vmatprep.subr.bf16.mxu0 0
        %603 = vmatpush1.bf16.msra.mxu0 0
        %604 = vmatprep.subr.bf16.mxu0 0
        %605 = vmatpush1.bf16.msra.mxu0 0
        %606 = vmatprep.subr.bf16.mxu0 0
        %607 = vmatpush1.bf16.msra.mxu0 0
        %608 = vmatprep.subr.bf16.mxu0 0
        %609 = vmatpush1.bf16.msra.mxu0 0
        %610 = vmatprep.subr.bf16.mxu0 0
        %611 = vmatpush1.bf16.msra.mxu0 0
        %612 = vmatprep.subr.bf16.mxu0 0
        %613 = vmatpush1.bf16.msra.mxu0 0
        %614 = vmatprep.subr.bf16.mxu0 0
        %615 = vmatpush1.bf16.msra.mxu0 0
        %616 = vmatprep.subr.bf16.mxu0 0
        %617 = vmatpush1.bf16.msra.mxu0 0
        %618 = vmatprep.subr.bf16.mxu0 0
        %619 = vmatpush1.bf16.msra.mxu0 0
        %620 = vmatprep.subr.bf16.mxu0 0
        %621 = vmatpush1.bf16.msra.mxu0 0
        %622 = vmatprep.mubr.bf16.mxu0 0
        %623 = vmatmul.mubr.bf16.gmra.mrb[0].mxu0 %v585
        %v624 = vpop.f32.mrb[0].mxu0
        %v625 = vadd.f32 0.0, %v624
        %v626 = vpop.f32.mrb[0].mxu0
        %v627 = vpop.f32.mrb[0].mxu0
        %v628 = vadd.f32 0.0, %v627
        %v629 = vpop.f32.mrb[0].mxu0
        %630 = vdwg.mxu0
        %v631 = vpack.c.bf16 %v628, %v625
        %v633 = vrot.slane %v631, 4
        %v636 = vunpack.c.l.b16 %v493
        %v637 = vunpack.c.l.b16 %v494
        %v638 = vpack.c.b16 %v637, %v636
        %v641 = vsel %vm511, %v633, 0
        %643 = vmatprep.subr.bf16.mxu0 0
        %644 = vmatpush1.bf16.msra.mxu0 %v638
        %645 = vmatprep.subr.bf16.mxu0 0
        %646 = vmatpush1.bf16.msra.mxu0 0
        %647 = vmatprep.subr.bf16.mxu0 0
        %648 = vmatpush1.bf16.msra.mxu0 0
        %649 = vmatprep.subr.bf16.mxu0 0
        %650 = vmatpush1.bf16.msra.mxu0 0
        %651 = vmatprep.subr.bf16.mxu0 0
        %652 = vmatpush1.bf16.msra.mxu0 0
        %653 = vmatprep.subr.bf16.mxu0 0
        %654 = vmatpush1.bf16.msra.mxu0 0
        %655 = vmatprep.subr.bf16.mxu0 0
        %656 = vmatpush1.bf16.msra.mxu0 0
        %657 = vmatprep.subr.bf16.mxu0 0
        %658 = vmatpush1.bf16.msra.mxu0 0
        %659 = vmatprep.subr.bf16.mxu0 0
        %660 = vmatpush1.bf16.msra.mxu0 0
        %661 = vmatprep.subr.bf16.mxu0 0
        %662 = vmatpush1.bf16.msra.mxu0 0
        %663 = vmatprep.subr.bf16.mxu0 0
        %664 = vmatpush1.bf16.msra.mxu0 0
        %665 = vmatprep.subr.bf16.mxu0 0
        %666 = vmatpush1.bf16.msra.mxu0 0
        %667 = vmatprep.subr.bf16.mxu0 0
        %668 = vmatpush1.bf16.msra.mxu0 0
        %669 = vmatprep.subr.bf16.mxu0 0
        %670 = vmatpush1.bf16.msra.mxu0 0
        %671 = vmatprep.subr.bf16.mxu0 0
        %672 = vmatpush1.bf16.msra.mxu0 0
        %673 = vmatprep.subr.bf16.mxu0 0
        %674 = vmatpush1.bf16.msra.mxu0 0
        %675 = vmatprep.mubr.bf16.mxu0 0
        %676 = vmatmul.mubr.bf16.gmra.mrb[0].mxu0 %v641
        %v677 = vpop.f32.mrb[0].mxu0
        %v678 = vadd.f32 0.0, %v677
        %v679 = vpop.f32.mrb[0].mxu0
        %v680 = vpop.f32.mrb[0].mxu0
        %v681 = vpop.f32.mrb[0].mxu0
        %682 = vdwg.mxu0
        %v685 = vunpack.c.l.b16 %v491
        %v686 = vunpack.c.l.b16 %v492
        %v687 = vpack.c.b16 %v686, %v685
        %v690 = vsel %vm511, %v631, 0
        %692 = vmatprep.subr.bf16.mxu0 0
        %693 = vmatpush1.bf16.msra.mxu0 %v687
        %694 = vmatprep.subr.bf16.mxu0 0
        %695 = vmatpush1.bf16.msra.mxu0 0
        %696 = vmatprep.subr.bf16.mxu0 0
        %697 = vmatpush1.bf16.msra.mxu0 0
        %698 = vmatprep.subr.bf16.mxu0 0
        %699 = vmatpush1.bf16.msra.mxu0 0
        %700 = vmatprep.subr.bf16.mxu0 0
        %701 = vmatpush1.bf16.msra.mxu0 0
        %702 = vmatprep.subr.bf16.mxu0 0
        %703 = vmatpush1.bf16.msra.mxu0 0
        %704 = vmatprep.subr.bf16.mxu0 0
        %705 = vmatpush1.bf16.msra.mxu0 0
        %706 = vmatprep.subr.bf16.mxu0 0
        %707 = vmatpush1.bf16.msra.mxu0 0
        %708 = vmatprep.subr.bf16.mxu0 0
        %709 = vmatpush1.bf16.msra.mxu0 0
        %710 = vmatprep.subr.bf16.mxu0 0
        %711 = vmatpush1.bf16.msra.mxu0 0
        %712 = vmatprep.subr.bf16.mxu0 0
        %713 = vmatpush1.bf16.msra.mxu0 0
        %714 = vmatprep.subr.bf16.mxu0 0
        %715 = vmatpush1.bf16.msra.mxu0 0
        %716 = vmatprep.subr.bf16.mxu0 0
        %717 = vmatpush1.bf16.msra.mxu0 0
        %718 = vmatprep.subr.bf16.mxu0 0
        %719 = vmatpush1.bf16.msra.mxu0 0
        %720 = vmatprep.subr.bf16.mxu0 0
        %721 = vmatpush1.bf16.msra.mxu0 0
        %722 = vmatprep.subr.bf16.mxu0 0
        %723 = vmatpush1.bf16.msra.mxu0 0
        %724 = vmatprep.mubr.bf16.mxu0 0
        %725 = vmatmul.mubr.bf16.gmra.mrb[0].mxu0 %v690
        %v726 = vpop.f32.mrb[0].mxu0
        %v727 = vadd.f32 %v678, %v726
        %v728 = vpop.f32.mrb[0].mxu0
        %v729 = vpop.f32.mrb[0].mxu0
        %v730 = vpop.f32.mrb[0].mxu0
        %731 = vdwg.mxu0
        %733 = vrot.lane.b32.xlu0 %v508, 96
        %v734 = vpop.permute.xlu0 %733
        %735 = vrot.lane.b32.xlu0 %v490, 48
        %v736 = vpop.permute.xlu0 %735
        %v738 = vsel %vm511, %v734, 0
        %v741 = vsel %vm511, %v736, 0
        %743 = vmatprep.subr.bf16.mxu0 0
        %744 = vmatpush1.bf16.xpose.msra.mxu0 %v741
        %745 = vmatprep.subr.bf16.mxu0 0
        %746 = vmatpush1.bf16.xpose.msra.mxu0 0
        %747 = vmatprep.subr.bf16.mxu0 0
        %748 = vmatpush1.bf16.xpose.msra.mxu0 0
        %749 = vmatprep.subr.bf16.mxu0 0
        %750 = vmatpush1.bf16.xpose.msra.mxu0 0
        %751 = vmatprep.subr.bf16.mxu0 0
        %752 = vmatpush1.bf16.xpose.msra.mxu0 0
        %753 = vmatprep.subr.bf16.mxu0 0
        %754 = vmatpush1.bf16.xpose.msra.mxu0 0
        %755 = vmatprep.subr.bf16.mxu0 0
        %756 = vmatpush1.bf16.xpose.msra.mxu0 0
        %757 = vmatprep.subr.bf16.mxu0 0
        %758 = vmatpush1.bf16.xpose.msra.mxu0 0
        %759 = vmatprep.subr.bf16.mxu0 0
        %760 = vmatpush1.bf16.xpose.msra.mxu0 0
        %761 = vmatprep.subr.bf16.mxu0 0
        %762 = vmatpush1.bf16.xpose.msra.mxu0 0
        %763 = vmatprep.subr.bf16.mxu0 0
        %764 = vmatpush1.bf16.xpose.msra.mxu0 0
        %765 = vmatprep.subr.bf16.mxu0 0
        %766 = vmatpush1.bf16.xpose.msra.mxu0 0
        %767 = vmatprep.subr.bf16.mxu0 0
        %768 = vmatpush1.bf16.xpose.msra.mxu0 0
        %769 = vmatprep.subr.bf16.mxu0 0
        %770 = vmatpush1.bf16.xpose.msra.mxu0 0
        %771 = vmatprep.subr.bf16.mxu0 0
        %772 = vmatpush1.bf16.xpose.msra.mxu0 0
        %773 = vmatprep.subr.bf16.mxu0 0
        %774 = vmatpush1.bf16.xpose.msra.mxu0 0
        %775 = vmatprep.mubr.bf16.mxu0 0
        %776 = vmatmul.mubr.bf16.gmra.mrb[0].mxu0 %v738
        %v777 = vpop.f32.mrb[0].mxu0
        %v778 = vadd.f32 %v499, %v777
        %v779 = vpop.f32.mrb[0].mxu0
        %v780 = vpop.f32.mrb[0].mxu0
        %v781 = vadd.f32 %v500, %v780
        %v782 = vpop.f32.mrb[0].mxu0
        %783 = vdwg.mxu0
        %v784 = vsel %vm558, %v778, -inf
        %785 = vmax.xlane.f32.xlu0 %v784
        %v786 = vpop.xlane.xlu0 %785
        %v787 = vsel %vm558, %v781, -inf
        %788 = vmax.xlane.f32.xlu0 %v787
        %v789 = vpop.xlane.xlu0 %788
        %v790 = vsub.f32 %v778, %v786
        %v791 = vsub.f32 %v781, %v789
        %v792 = vmul.f32 %v790, 1.442695
        %v793 = vpow.pop %v792
        %v794 = vmul.f32 %v791, 1.442695
        %v795 = vpow.pop %v794
        %v796 = vsel %vm558, %v793, 0.0
        %797 = vadd.xlane.f32.xlu0 %v796
        %v798 = vpop.xlane.xlu0 %797
        %v799 = vsel %vm558, %v795, 0.0
        %800 = vadd.xlane.f32.xlu0 %v799
        %v801 = vpop.xlane.xlu0 %800
        %v802 = vrcp.pop %v798
        %v803 = vrcp.pop %v801
        %v804 = vmul.f32 %v793, %v802
        %v805 = vmul.f32 %v795, %v803
        %v806 = vpack.c.bf16 %v805, %v804
        %807 = vrot.lane.b32.xlu0 %v490, 16
        %v808 = vpop.permute.xlu0 %807
        %v810 = vsel %vm558, %v806, 0
        %v813 = vsel %vm505, %v808, 0
        %815 = vmatprep.subr.bf16.mxu0 0
        %816 = vmatpush1.bf16.msra.mxu0 %v813
        %817 = vmatprep.subr.bf16.mxu0 0
        %818 = vmatpush1.bf16.msra.mxu0 0
        %819 = vmatprep.subr.bf16.mxu0 0
        %820 = vmatpush1.bf16.msra.mxu0 0
        %821 = vmatprep.subr.bf16.mxu0 0
        %822 = vmatpush1.bf16.msra.mxu0 0
        %823 = vmatprep.subr.bf16.mxu0 0
        %824 = vmatpush1.bf16.msra.mxu0 0
        %825 = vmatprep.subr.bf16.mxu0 0
        %826 = vmatpush1.bf16.msra.mxu0 0
        %827 = vmatprep.subr.bf16.mxu0 0
        %828 = vmatpush1.bf16.msra.mxu0 0
        %829 = vmatprep.subr.bf16.mxu0 0
        %830 = vmatpush1.bf16.msra.mxu0 0
        %831 = vmatprep.subr.bf16.mxu0 0
        %832 = vmatpush1.bf16.msra.mxu0 0
        %833 = vmatprep.subr.bf16.mxu0 0
        %834 = vmatpush1.bf16.msra.mxu0 0
        %835 = vmatprep.subr.bf16.mxu0 0
        %836 = vmatpush1.bf16.msra.mxu0 0
        %837 = vmatprep.subr.bf16.mxu0 0
        %838 = vmatpush1.bf16.msra.mxu0 0
        %839 = vmatprep.subr.bf16.mxu0 0
        %840 = vmatpush1.bf16.msra.mxu0 0
        %841 = vmatprep.subr.bf16.mxu0 0
        %842 = vmatpush1.bf16.msra.mxu0 0
        %843 = vmatprep.subr.bf16.mxu0 0
        %844 = vmatpush1.bf16.msra.mxu0 0
        %845 = vmatprep.subr.bf16.mxu0 0
        %846 = vmatpush1.bf16.msra.mxu0 0
        %847 = vmatprep.mubr.bf16.mxu0 0
        %848 = vmatmul.mubr.bf16.gmra.mrb[0].mxu0 %v810
        %v849 = vpop.f32.mrb[0].mxu0
        %v850 = vadd.f32 0.0, %v849
        %v851 = vpop.f32.mrb[0].mxu0
        %v852 = vpop.f32.mrb[0].mxu0
        %v853 = vadd.f32 0.0, %v852
        %v854 = vpop.f32.mrb[0].mxu0
        %855 = vdwg.mxu0
        %v856 = vpack.c.bf16 %v853, %v850
        %v859 = vunpack.c.l.b16 %v495
        %v860 = vunpack.c.l.b16 %v496
        %v861 = vpack.c.b16 %v860, %v859
        %v864 = vsel %vm511, %v856, 0
        %866 = vmatprep.subr.bf16.mxu0 0
        %867 = vmatpush1.bf16.msra.mxu0 %v861
        %868 = vmatprep.subr.bf16.mxu0 0
        %869 = vmatpush1.bf16.msra.mxu0 0
        %870 = vmatprep.subr.bf16.mxu0 0
        %871 = vmatpush1.bf16.msra.mxu0 0
        %872 = vmatprep.subr.bf16.mxu0 0
        %873 = vmatpush1.bf16.msra.mxu0 0
        %874 = vmatprep.subr.bf16.mxu0 0
        %875 = vmatpush1.bf16.msra.mxu0 0
        %876 = vmatprep.subr.bf16.mxu0 0
        %877 = vmatpush1.bf16.msra.mxu0 0
        %878 = vmatprep.subr.bf16.mxu0 0
        %879 = vmatpush1.bf16.msra.mxu0 0
        %880 = vmatprep.subr.bf16.mxu0 0
        %881 = vmatpush1.bf16.msra.mxu0 0
        %882 = vmatprep.subr.bf16.mxu0 0
        %883 = vmatpush1.bf16.msra.mxu0 0
        %884 = vmatprep.subr.bf16.mxu0 0
        %885 = vmatpush1.bf16.msra.mxu0 0
        %886 = vmatprep.subr.bf16.mxu0 0
        %887 = vmatpush1.bf16.msra.mxu0 0
        %888 = vmatprep.subr.bf16.mxu0 0
        %889 = vmatpush1.bf16.msra.mxu0 0
        %890 = vmatprep.subr.bf16.mxu0 0
        %891 = vmatpush1.bf16.msra.mxu0 0
        %892 = vmatprep.subr.bf16.mxu0 0
        %893 = vmatpush1.bf16.msra.mxu0 0
        %894 = vmatprep.subr.bf16.mxu0 0
        %895 = vmatpush1.bf16.msra.mxu0 0
        %896 = vmatprep.subr.bf16.mxu0 0
        %897 = vmatpush1.bf16.msra.mxu0 0
        %898 = vmatprep.mubr.bf16.mxu0 0
        %899 = vmatmul.mubr.bf16.gmra.mrb[0].mxu0 %v864
        %v900 = vpop.f32.mrb[0].mxu0
        %v901 = vadd.f32 0.0, %v900
        %v902 = vpop.f32.mrb[0].mxu0
        %v903 = vpop.f32.mrb[0].mxu0
        %v904 = vpop.f32.mrb[0].mxu0
        %905 = vdwg.mxu0
        %v906 = vadd.f32 %v727, %v901
        %v908 = vrot.slane %v856, 4
        %v911 = vunpack.c.l.b16 %v497
        %v912 = vunpack.c.l.b16 %v498
        %v913 = vpack.c.b16 %v912, %v911
        %v916 = vsel %vm511, %v908, 0
        %918 = vmatprep.subr.bf16.mxu0 0
        %919 = vmatpush1.bf16.msra.mxu0 %v913
        %920 = vmatprep.subr.bf16.mxu0 0
        %921 = vmatpush1.bf16.msra.mxu0 0
        %922 = vmatprep.subr.bf16.mxu0 0
        %923 = vmatpush1.bf16.msra.mxu0 0
        %924 = vmatprep.subr.bf16.mxu0 0
        %925 = vmatpush1.bf16.msra.mxu0 0
        %926 = vmatprep.subr.bf16.mxu0 0
        %927 = vmatpush1.bf16.msra.mxu0 0
        %928 = vmatprep.subr.bf16.mxu0 0
        %929 = vmatpush1.bf16.msra.mxu0 0
        %930 = vmatprep.subr.bf16.mxu0 0
        %931 = vmatpush1.bf16.msra.mxu0 0
        %932 = vmatprep.subr.bf16.mxu0 0
        %933 = vmatpush1.bf16.msra.mxu0 0
        %934 = vmatprep.subr.bf16.mxu0 0
        %935 = vmatpush1.bf16.msra.mxu0 0
        %936 = vmatprep.subr.bf16.mxu0 0
        %937 = vmatpush1.bf16.msra.mxu0 0
        %938 = vmatprep.subr.bf16.mxu0 0
        %939 = vmatpush1.bf16.msra.mxu0 0
        %940 = vmatprep.subr.bf16.mxu0 0
        %941 = vmatpush1.bf16.msra.mxu0 0
        %942 = vmatprep.subr.bf16.mxu0 0
        %943 = vmatpush1.bf16.msra.mxu0 0
        %944 = vmatprep.subr.bf16.mxu0 0
        %945 = vmatpush1.bf16.msra.mxu0 0
        %946 = vmatprep.subr.bf16.mxu0 0
        %947 = vmatpush1.bf16.msra.mxu0 0
        %948 = vmatprep.subr.bf16.mxu0 0
        %949 = vmatpush1.bf16.msra.mxu0 0
        %950 = vmatprep.mubr.bf16.mxu0 0
        %951 = vmatmul.mubr.bf16.gmra.mrb[0].mxu0 %v916
        %v952 = vpop.f32.mrb[0].mxu0
        %v953 = vadd.f32 0.0, %v952
        %v954 = vpop.f32.mrb[0].mxu0
        %v955 = vpop.f32.mrb[0].mxu0
        %v956 = vpop.f32.mrb[0].mxu0
        %957 = vdwg.mxu0
        %v958 = vadd.f32 %v906, %v953
        %v959 = vadd.f32 %v383, %v958
        %v960 = vmul.f32 %v959, %v959
        %v961 = vsel %vm385, %v960, 0.0
        %962 = vadd.xlane.f32.xlu0 %v961
        %v963 = vpop.xlane.xlu0 %962
        %v964 = vmul.f32 %v963, %v389
        %v965 = vadd.f32 %v964, 1e-05
        %v966 = vrsqrt.pop %v965
        %v967 = vmul.f32 %v959, %v966
        %v968 = vld [vmem:[%s6] sm:$0x1]
        %v970 = vlaneseq
        %v971 = vshrl.u32 %v970, 7
        %v972 = vsub.s32 0, %v971
        %v973 = vrot.slane %v968, %v972
        %v975 = vmul.f32 %v967, %v973
        %v976 = vpack.c.bf16 %v975, %v975
        %v977 = vld [vmem:[%s3] sm:$0xff]
        %v978 = vld [vmem:[%s3 + $0x8] sm:$0xff]
        %v979 = vld [vmem:[%s3 + $0x10] sm:$0xff]
        %v980 = vld [vmem:[%s3 + $0x18] sm:$0xff]
        %v981 = vld [vmem:[%s3 + $0x20] sm:$0xff]
        %v982 = vld [vmem:[%s3 + $0x28] sm:$0xff]
        %v983 = vld [vmem:[%s3 + $0x30] sm:$0xff]
        %v984 = vld [vmem:[%s3 + $0x38] sm:$0xff]
        %v993 = vunpack.c.l.b16 %v977
        %v994 = vunpack.c.h.b16 %v977
        %v995 = vunpack.c.l.b16 %v978
        %v996 = vunpack.c.h.b16 %v978
        %v997 = vunpack.c.l.b16 %v979
        %v998 = vunpack.c.h.b16 %v979
        %v999 = vunpack.c.l.b16 %v980
        %v1000 = vunpack.c.h.b16 %v980
        %v1001 = vunpack.c.l.b16 %v981
        %v1002 = vunpack.c.h.b16 %v981
        %v1003 = vunpack.c.l.b16 %v982
        %v1004 = vunpack.c.h.b16 %v982
        %v1005 = vunpack.c.l.b16 %v983
        %v1006 = vunpack.c.h.b16 %v983
        %v1007 = vunpack.c.l.b16 %v984
        %v1008 = vunpack.c.h.b16 %v984
        %v1009 = vpack.c.b16 %v995, %v993
        %v1010 = vpack.c.b16 %v996, %v994
        %v1011 = vpack.c.b16 %v999, %v997
        %v1012 = vpack.c.b16 %v1000, %v998
        %v1013 = vpack.c.b16 %v1003, %v1001
        %v1014 = vpack.c.b16 %v1004, %v1002
        %v1015 = vpack.c.b16 %v1007, %v1005
        %v1016 = vpack.c.b16 %v1008, %v1006
        %v1026 = vsel %vm385, %v976, 0
        %1028 = vmatprep.subr.bf16.mxu0 %v1010
        %1029 = vmatpush1.bf16.msra.mxu0 %v1009
        %1030 = vmatprep.subr.bf16.mxu0 %v1012
        %1031 = vmatpush1.bf16.msra.mxu0 %v1011
        %1032 = vmatprep.subr.bf16.mxu0 %v1014
        %1033 = vmatpush1.bf16.msra.mxu0 %v1013
        %1034 = vmatprep.subr.bf16.mxu0 %v1016
        %1035 = vmatpush1.bf16.msra.mxu0 %v1015
        %1036 = vmatprep.subr.bf16.mxu0 0
        %1037 = vmatpush1.bf16.msra.mxu0 0
        %1038 = vmatprep.subr.bf16.mxu0 0
        %1039 = vmatpush1.bf16.msra.mxu0 0
        %1040 = vmatprep.subr.bf16.mxu0 0
        %1041 = vmatpush1.bf16.msra.mxu0 0
        %1042 = vmatprep.subr.bf16.mxu0 0
        %1043 = vmatpush1.bf16.msra.mxu0 0
        %1044 = vmatprep.subr.bf16.mxu0 0
        %1045 = vmatpush1.bf16.msra.mxu0 0
        %1046 = vmatprep.subr.bf16.mxu0 0
        %1047 = vmatpush1.bf16.msra.mxu0 0
        %1048 = vmatprep.subr.bf16.mxu0 0
        %1049 = vmatpush1.bf16.msra.mxu0 0
        %1050 = vmatprep.subr.bf16.mxu0 0
        %1051 = vmatpush1.bf16.msra.mxu0 0
        %1052 = vmatprep.subr.bf16.mxu0 0
        %1053 = vmatpush1.bf16.msra.mxu0 0
        %1054 = vmatprep.subr.bf16.mxu0 0
        %1055 = vmatpush1.bf16.msra.mxu0 0
        %1056 = vmatprep.subr.bf16.mxu0 0
        %1057 = vmatpush1.bf16.msra.mxu0 0
        %1058 = vmatprep.subr.bf16.mxu0 0
        %1059 = vmatpush1.bf16.msra.mxu0 0
        %1060 = vmatprep.mubr.bf16.mxu0 0
        %1061 = vmatmul.mubr.bf16.gmra.mrb[0].mxu0 %v1026
        %v1062 = vpop.f32.mrb[0].mxu0
        %v1063 = vadd.f32 0.0, %v1062
        %v1064 = vpop.f32.mrb[0].mxu0
        %v1065 = vadd.f32 0.0, %v1064
        %v1066 = vpop.f32.mrb[0].mxu0
        %v1067 = vpop.f32.mrb[0].mxu0
        %1068 = vdwg.mxu0
        %v1069 = vxor.u32 %v1063, 2147483648
        %v1070 = vmul.f32 %v1069, 1.442695
        %v1071 = vpow.pop %v1070
        %v1072 = vadd.f32 %v1071, 1.0
        %v1073 = vrcp.pop %v1072
        %v1074 = vmul.f32 1.0, %v1073
        %v1075 = vmul.f32 %v1063, %v1074
        %v1076 = vmul.f32 %v1075, %v1065
        %v1077 = vpack.c.bf16 %v1076, %v1076
        %v1078 = vld [vmem:[%s4] sm:$0xf]
        %v1079 = vld [vmem:[%s4 + $0x4] sm:$0xf]
        %v1080 = vld [vmem:[%s4 + $0x8] sm:$0xf]
        %v1081 = vld [vmem:[%s4 + $0xc] sm:$0xf]
        %v1082 = vld [vmem:[%s4 + $0x10] sm:$0xf]
        %v1083 = vld [vmem:[%s4 + $0x14] sm:$0xf]
        %v1084 = vld [vmem:[%s4 + $0x18] sm:$0xf]
        %v1085 = vld [vmem:[%s4 + $0x1c] sm:$0xf]
        %v1086 = vld [vmem:[%s4 + $0x20] sm:$0xf]
        %v1087 = vld [vmem:[%s4 + $0x24] sm:$0xf]
        %v1088 = vld [vmem:[%s4 + $0x28] sm:$0xf]
        %v1089 = vld [vmem:[%s4 + $0x2c] sm:$0xf]
        %v1090 = vld [vmem:[%s4 + $0x30] sm:$0xf]
        %v1091 = vld [vmem:[%s4 + $0x34] sm:$0xf]
        %v1092 = vld [vmem:[%s4 + $0x38] sm:$0xf]
        %v1093 = vld [vmem:[%s4 + $0x3c] sm:$0xf]
        %v1110 = vunpack.c.l.b16 %v1078
        %v1111 = vunpack.c.l.b16 %v1079
        %v1112 = vunpack.c.l.b16 %v1080
        %v1113 = vunpack.c.l.b16 %v1081
        %v1114 = vunpack.c.l.b16 %v1082
        %v1115 = vunpack.c.l.b16 %v1083
        %v1116 = vunpack.c.l.b16 %v1084
        %v1117 = vunpack.c.l.b16 %v1085
        %v1118 = vunpack.c.l.b16 %v1086
        %v1119 = vunpack.c.l.b16 %v1087
        %v1120 = vunpack.c.l.b16 %v1088
        %v1121 = vunpack.c.l.b16 %v1089
        %v1122 = vunpack.c.l.b16 %v1090
        %v1123 = vunpack.c.l.b16 %v1091
        %v1124 = vunpack.c.l.b16 %v1092
        %v1125 = vunpack.c.l.b16 %v1093
        %v1126 = vpack.c.b16 %v1111, %v1110
        %v1127 = vpack.c.b16 %v1113, %v1112
        %v1128 = vpack.c.b16 %v1115, %v1114
        %v1129 = vpack.c.b16 %v1117, %v1116
        %v1130 = vpack.c.b16 %v1119, %v1118
        %v1131 = vpack.c.b16 %v1121, %v1120
        %v1132 = vpack.c.b16 %v1123, %v1122
        %v1133 = vpack.c.b16 %v1125, %v1124
        %1142 = vmatprep.subr.bf16.mxu0 0
        %1143 = vmatpush1.bf16.msra.mxu0 %v1126
        %1144 = vmatprep.subr.bf16.mxu0 0
        %1145 = vmatpush1.bf16.msra.mxu0 %v1127
        %1146 = vmatprep.subr.bf16.mxu0 0
        %1147 = vmatpush1.bf16.msra.mxu0 %v1128
        %1148 = vmatprep.subr.bf16.mxu0 0
        %1149 = vmatpush1.bf16.msra.mxu0 %v1129
        %1150 = vmatprep.subr.bf16.mxu0 0
        %1151 = vmatpush1.bf16.msra.mxu0 %v1130
        %1152 = vmatprep.subr.bf16.mxu0 0
        %1153 = vmatpush1.bf16.msra.mxu0 %v1131
        %1154 = vmatprep.subr.bf16.mxu0 0
        %1155 = vmatpush1.bf16.msra.mxu0 %v1132
        %1156 = vmatprep.subr.bf16.mxu0 0
        %1157 = vmatpush1.bf16.msra.mxu0 %v1133
        %1158 = vmatprep.subr.bf16.mxu0 0
        %1159 = vmatpush1.bf16.msra.mxu0 0
        %1160 = vmatprep.subr.bf16.mxu0 0
        %1161 = vmatpush1.bf16.msra.mxu0 0
        %1162 = vmatprep.subr.bf16.mxu0 0
        %1163 = vmatpush1.bf16.msra.mxu0 0
        %1164 = vmatprep.subr.bf16.mxu0 0
        %1165 = vmatpush1.bf16.msra.mxu0 0
        %1166 = vmatprep.subr.bf16.mxu0 0
        %1167 = vmatpush1.bf16.msra.mxu0 0
        %1168 = vmatprep.subr.bf16.mxu0 0
        %1169 = vmatpush1.bf16.msra.mxu0 0
        %1170 = vmatprep.subr.bf16.mxu0 0
        %1171 = vmatpush1.bf16.msra.mxu0 0
        %1172 = vmatprep.subr.bf16.mxu0 0
        %1173 = vmatpush1.bf16.msra.mxu0 0
        %1174 = vmatprep.mubr.bf16.mxu0 0
        %1175 = vmatmul.mubr.bf16.gmra.mrb[0].mxu0 %v1077
        %v1176 = vpop.f32.mrb[0].mxu0
        %v1177 = vadd.f32 0.0, %v1176
        %v1178 = vpop.f32.mrb[0].mxu0
        %v1179 = vpop.f32.mrb[0].mxu0
        %v1180 = vpop.f32.mrb[0].mxu0
        %1181 = vdwg.mxu0
        %v1182 = vadd.f32 %v959, %v1177
        %v1183 = vsel %vm385, %v1182, 0.0
        %1184 = vst [vmem:[%s377] sm:$0xff] %v1183
        %s1185 = sand.u32 %s269, 1
        %s1186 = scalar_lea.sflag [#allocation3], %s1185
        %s1187 = sand.u32 %s269, 1
        %s1188 = smul.addr %s1187, 8
        %s1189 = scalar_lea.vmem [#allocation2], %s1188
        // Predicated region
        $region65: #{llama3_block.1} parent=63 // pred_check
          %p1190 = pneg %p279
        $region66: #{llama3_block.1} parent=63 // pred_check_branch
          %1192 = sbr.rel (%p1190) target = $region68
        $region67: #{llama3_block.1} parent=63 // pred_region
          %s1194 = ssub.s32 128, 128
          %1195 = vsyncadd %s1186, %s1194
          %s1196 = smul.addr %s25, 128
          %s1197 = scalar_lea.hbm %s11, %s1196
          %s1199 = sshll.u32 %s1189, 4
          %s1200 = int_to_ptr.vmem [resolvable:$true] %s1199
          %1202 = dma.vmem_to_hbm [thread:$0]  %s1200, 128, %s1197, %s1186
        $region68: #{llama3_block.1} parent=63 // pred_fallthru
          _
      $region64: #{llama3_block.1} parent=5 // pred_fallthru
        _
      %p1203 = scmp.le.s32.totalorder 2, %s20
      // Predicated region
      $region69: #{llama3_block.1} parent=5 // pred_check
        %p1204 = pneg %p1203
      $region70: #{llama3_block.1} parent=5 // pred_check_branch
        %1206 = sbr.rel (%p1204) target = $region72
      $region71: #{llama3_block.1} parent=5 // pred_region
        %s1207 = ssub.s32 %s20, 2
        // Predicated region
        $region73: #{llama3_block.1} parent=71 // pred_check
          %p1208 = pneg %p285
        $region74: #{llama3_block.1} parent=71 // pred_check_branch
          %1210 = sbr.rel (%p1208) target = $region76
        $region75: #{llama3_block.1} parent=71 // pred_region
          %s1211 = sand.u32 %s270, 1
          %s1212 = scalar_lea.sflag [#allocation3], %s1211
          %s1213 = sand.u32 %s270, 1
          %s1214 = smul.addr %s1213, 8
          %s1215 = scalar_lea.vmem [#allocation2], %s1214
          %1216 = dma.done %s1212, 128
        $region76: #{llama3_block.1} parent=71 // pred_fallthru
          _
      $region72: #{llama3_block.1} parent=5 // pred_fallthru
        _
    $region6: #{llama3_block.1} parent=1 // loop_footer
      %s24 = sadd.s32 1, %s20
    $region7: #{llama3_block.1} parent=1 // loop_footer_branch
      %19 = sbr.rel target = $region3
    $region8: #{llama3_block.1} parent=1 // loop_exit
      _
    %1217 = vsyncpa [#allocation3], 1
    %s1218 = scalar_lea.sflag [#allocation3], 1
    %1219 = vsyncpa %s1218, 1

</llo_original>
